<compile_context>
chip_gen: v7x
topology: tpu7x:2x2x1
jax: 0.10.0
libtpu: 0.0.40
codegen_flags: <defaults>
</compile_context>

<pallas_src>
import jax
import jax.numpy as jnp
from jax.experimental import pallas as pl
from jax.experimental.pallas import tpu as pltpu

# ---- model hyper-parameters (consistent with the PyTorch module) -------------
EMBED_DIM = 32
N_HEADS = 4
FF_DIM = 128
HEAD_DIM = EMBED_DIM // N_HEADS
LN_EPS = 1e-5


def _layernorm(h, gamma, beta):
    mu = jnp.mean(h, axis=-1, keepdims=True)
    var = jnp.mean((h - mu) ** 2, axis=-1, keepdims=True)  # biased var (PyTorch)
    return (h - mu) * jax.lax.rsqrt(var + LN_EPS) * gamma + beta


def encoder_layer_kernel(
    x_ref,        # (M, E)   f32    M = B*S tokens
    mask_ref,     # (M, M)   f32    additive block-diagonal batch mask (0 / -1e30)
    wqkv_ref,     # (E, 3E)  bf16   fused QKV weight, 1/sqrt(Dh) folded into Q cols
    bqkv_ref,     # (1, 3E)  f32
    wo_ref,       # (E, E)   bf16   out-proj weight (transposed nn.Linear weight)
    bo_ref,       # (1, E)   f32
    w1_ref,       # (E, FF)  bf16
    b1_ref,       # (1, FF)  f32
    w2_ref,       # (FF, E)  bf16
    b2_ref,       # (1, E)   f32
    g1_ref, be1_ref,   # (1, E)  norm1 gamma / beta
    g2_ref, be2_ref,   # (1, E)  norm2 gamma / beta
    out_ref,      # (M, E)   f32
):
    M, E = x_ref.shape
    H, Dh = N_HEADS, HEAD_DIM
    x = x_ref[...].astype(jnp.float32)                                   # (M, E)

    # ---- fused QKV projection: one (M,E)@(E,3E) matmul, bf16 operands -------
    qkv = jnp.dot(x.astype(jnp.bfloat16), wqkv_ref[...],
                  preferred_element_type=jnp.float32) + bqkv_ref[...]    # (M, 3E)

    def to_heads(m):                                   # (M, E) -> (H, M, Dh)
        return jnp.transpose(m.reshape(M, H, Dh), (1, 0, 2))

    q = to_heads(qkv[:, :E])          # 1/sqrt(Dh) already folded in
    k = to_heads(qkv[:, E:2 * E])
    v = to_heads(qkv[:, 2 * E:])

    # ---- attention over all M tokens (block-diagonal batch mask bias) -------
    s = jnp.einsum("hmd,hnd->hmn", q, k,
                   preferred_element_type=jnp.float32)                   # (H, M, M)
    s = s + mask_ref[...][None, :, :]
    s = s - jnp.max(s, axis=-1, keepdims=True)
    p = jnp.exp(s)
    p = p * pl.reciprocal(jnp.sum(p, axis=-1, keepdims=True), approx=True)
    ctx = jnp.einsum("hmn,hnd->hmd", p, v,
                     preferred_element_type=jnp.float32)                 # (H, M, Dh)

    # ---- merge heads once, single (M,E)@(E,E) output projection -------------
    ctx_flat = jnp.transpose(ctx, (1, 0, 2)).reshape(M, E)               # (M, E)
    attn_out = jnp.dot(ctx_flat.astype(jnp.bfloat16), wo_ref[...],
                       preferred_element_type=jnp.float32) + bo_ref[...]

    # ---- residual + norm1 (f32) ----------------------------------------------
    h1 = _layernorm(x + attn_out, g1_ref[...], be1_ref[...])

    # ---- feed-forward (bf16 matmuls, f32 accumulate / elementwise) -----------
    ff = jnp.dot(h1.astype(jnp.bfloat16), w1_ref[...],
                 preferred_element_type=jnp.float32) + b1_ref[...]
    ff = jnp.maximum(ff, 0.0)                                            # ReLU
    ff = jnp.dot(ff.astype(jnp.bfloat16), w2_ref[...],
                 preferred_element_type=jnp.float32) + b2_ref[...]

    # ---- residual + norm2 (f32) ----------------------------------------------
    out = _layernorm(h1 + ff, g2_ref[...], be2_ref[...])
    out_ref[...] = out.astype(out_ref.dtype)


def _full_spec(a):
    n = a.ndim
    return pl.BlockSpec(a.shape, lambda i, _n=n: (0,) * _n)


def transformer_encoder_layer(x, kparams):
    """x: (B, S, E) float32 (batch_first). kparams: kernel-layout params."""
    B, S, E = x.shape
    assert E == EMBED_DIM
    M = B * S
    x2 = x.reshape(M, E)        # free XLA reshape outside the kernel

    # Static block-diagonal batch mask (tokens of different batch elements
    # never attend to each other).  NOTE: every row has >= S unmasked entries,
    # so the softmax denominator is never ~0.
    tok_b = jnp.arange(M, dtype=jnp.int32) // S
    mask = jnp.where(tok_b[:, None] == tok_b[None, :], 0.0, -1e30).astype(jnp.float32)

    args = (
        x2, mask,
        kparams["wqkv"], kparams["bqkv"],
        kparams["wo_t"], kparams["bo"],
        kparams["w1_t"], kparams["b1"],
        kparams["w2_t"], kparams["b2"],
        kparams["g1"], kparams["be1"],
        kparams["g2"], kparams["be2"],
    )

    grid_spec = pltpu.PrefetchScalarGridSpec(
        num_scalar_prefetch=0,
        grid=(1,),                       # whole (tiny) problem in one step
        in_specs=[_full_spec(a) for a in args],
        out_specs=pl.BlockSpec((M, E), lambda i: (0, 0)),
    )

    flops = (2 * M * E * 3 * E            # QKV
             + 2 * 2 * N_HEADS * M * M * HEAD_DIM   # scores + ctx
             + 2 * M * E * E              # out-proj
             + 2 * 2 * M * E * FF_DIM)    # FFN
    cost = pl.CostEstimate(flops=flops,
                           transcendentals=N_HEADS * M * M + 2 * M,
                           bytes_accessed=32 * 1024)

    out2 = pl.pallas_call(
        encoder_layer_kernel,
        out_shape=jax.ShapeDtypeStruct((M, E), jnp.float32),
        grid_spec=grid_spec,
        compiler_params=pltpu.CompilerParams(
            dimension_semantics=("arbitrary",)),
        cost_estimate=cost,
    )(*args)
    return out2.reshape(B, S, E)


# ---------------- parameter construction / re-layout -------------------------
def init_torch_params(key):
    """Deterministic synthetic params in PyTorch layout (MultiheadAttention + FFN + LN)."""
    ks = jax.random.split(key, 8)
    sc = 0.05
    return {
        "w_in": sc * jax.random.normal(ks[0], (3 * EMBED_DIM, EMBED_DIM), jnp.float32),
        "b_in": sc * jax.random.normal(ks[1], (3 * EMBED_DIM,), jnp.float32),
        "wo":   sc * jax.random.normal(ks[2], (EMBED_DIM, EMBED_DIM), jnp.float32),
        "bo":   sc * jax.random.normal(ks[3], (EMBED_DIM,), jnp.float32),
        "w1":   sc * jax.random.normal(ks[4], (FF_DIM, EMBED_DIM), jnp.float32),
        "b1":   sc * jax.random.normal(ks[5], (FF_DIM,), jnp.float32),
        "w2":   sc * jax.random.normal(ks[6], (EMBED_DIM, FF_DIM), jnp.float32),
        "b2":   sc * jax.random.normal(ks[7], (EMBED_DIM,), jnp.float32),
        "g1": jnp.ones((EMBED_DIM,), jnp.float32),
        "be1": jnp.zeros((EMBED_DIM,), jnp.float32),
        "g2": jnp.ones((EMBED_DIM,), jnp.float32),
        "be2": jnp.zeros((EMBED_DIM,), jnp.float32),
    }


def prepare_kernel_params(p):
    """One-time re-layout: fused bf16 QKV / out-proj / FFN weights, f32 biases & LN."""
    E = EMBED_DIM
    scale = 1.0 / float(HEAD_DIM) ** 0.5

    # nn.Linear computes x @ W.T + b.  Fuse Q|K|V: Wqkv = w_in.T -> (E, 3E),
    # with 1/sqrt(Dh) folded into the Q output columns (and bias).
    col_scale = jnp.concatenate(
        [jnp.full((E,), scale, jnp.float32), jnp.ones((2 * E,), jnp.float32)])
    wqkv = (p["w_in"].T * col_scale[None, :]).astype(jnp.bfloat16)       # (E, 3E)
    bqkv = (p["b_in"] * col_scale)[None, :].astype(jnp.float32)          # (1, 3E)

    return {
        "wqkv": wqkv, "bqkv": bqkv,
        "wo_t": p["wo"].T.astype(jnp.bfloat16),                          # (E, E)
        "bo": p["bo"][None, :].astype(jnp.float32),
        "w1_t": p["w1"].T.astype(jnp.bfloat16), "b1": p["b1"][None, :],
        "w2_t": p["w2"].T.astype(jnp.bfloat16), "b2": p["b2"][None, :],
        "g1": p["g1"][None, :], "be1": p["be1"][None, :],
        "g2": p["g2"][None, :], "be2": p["be2"][None, :],
    }


# ---------------- pure-JAX reference (PyTorch eval-mode semantics) -----------
def ref_forward(x, p):
    E, H, Dh = EMBED_DIM, N_HEADS, HEAD_DIM
    scale = 1.0 / float(Dh) ** 0.5

    def ln(h, g, b):
        mu = h.mean(-1, keepdims=True)
        var = ((h - mu) ** 2).mean(-1, keepdims=True)
        return (h - mu) / jnp.sqrt(var + LN_EPS) * g + b

    def per_batch(xb):
        qkv = xb @ p["w_in"].T + p["b_in"]
        q, k, v = qkv[:, :E], qkv[:, E:2 * E], qkv[:, 2 * E:]
        outs = []
        for h in range(H):
            sl = slice(h * Dh, (h + 1) * Dh)
            s = (q[:, sl] * scale) @ k[:, sl].T
            pm = jax.nn.softmax(s, axis=-1)
            outs.append(pm @ v[:, sl])
        ctx = jnp.concatenate(outs, axis=-1)
        attn = ctx @ p["wo"].T + p["bo"]
        h1 = ln(xb + attn, p["g1"], p["be1"])
        ff = jnp.maximum(h1 @ p["w1"].T + p["b1"], 0.0) @ p["w2"].T + p["b2"]
        return ln(h1 + ff, p["g2"], p["be2"])

    return jax.vmap(per_batch)(x)


if __name__ == "__main__":
    key = jax.random.PRNGKey(0)
    pkey, xkey = jax.random.split(key)
    tparams = init_torch_params(pkey)
    kparams = prepare_kernel_params(tparams)

    B, S = 2, 8
    x = jax.random.normal(xkey, (B, S, EMBED_DIM), jnp.float32)   # (B, S, E), batch_first

    out = jax.block_until_ready(transformer_encoder_layer(x, kparams))
    ref = jax.block_until_ready(ref_forward(x, tparams))

    assert out.shape == (B, S, EMBED_DIM)
    # bf16 matmul operands + approx reciprocal in softmax -> looser tolerance
    assert jnp.allclose(out, ref, rtol=2e-2, atol=2e-2), "mismatch vs JAX reference"
    print("KERNEL_OK")
</pallas_src>

<mosaic_0001>
module attributes {stable_mosaic.version = 11 : i64} {
  func.func @encoder_layer_kernel(%arg0: i32, %arg1: memref<16x32xf32, #tpu.memory_space<vmem>>, %arg2: memref<16x16xf32, #tpu.memory_space<vmem>>, %arg3: memref<32x96xbf16, #tpu.memory_space<vmem>>, %arg4: memref<1x96xf32, #tpu.memory_space<vmem>>, %arg5: memref<32x32xbf16, #tpu.memory_space<vmem>>, %arg6: memref<1x32xf32, #tpu.memory_space<vmem>>, %arg7: memref<32x128xbf16, #tpu.memory_space<vmem>>, %arg8: memref<1x128xf32, #tpu.memory_space<vmem>>, %arg9: memref<128x32xbf16, #tpu.memory_space<vmem>>, %arg10: memref<1x32xf32, #tpu.memory_space<vmem>>, %arg11: memref<1x32xf32, #tpu.memory_space<vmem>>, %arg12: memref<1x32xf32, #tpu.memory_space<vmem>>, %arg13: memref<1x32xf32, #tpu.memory_space<vmem>>, %arg14: memref<1x32xf32, #tpu.memory_space<vmem>>, %arg15: memref<16x32xf32, #tpu.memory_space<vmem>>) attributes {dimension_semantics = [#tpu.dimension_semantics<arbitrary>], iteration_bounds = array<i64: 1>, scalar_prefetch = 0 : i64, scratch_operands = 0 : i64, tpu.core_type = #tpu.core_type<tc>, window_params = [{pipeline_mode = #tpu.pipeline_mode<synchronous>, transform_indices = @transform_0, window_bounds = array<i64: 16, 32>}, {pipeline_mode = #tpu.pipeline_mode<synchronous>, transform_indices = @transform_1, window_bounds = array<i64: 16, 16>}, {pipeline_mode = #tpu.pipeline_mode<synchronous>, transform_indices = @transform_2, window_bounds = array<i64: 32, 96>}, {pipeline_mode = #tpu.pipeline_mode<synchronous>, transform_indices = @transform_3, window_bounds = array<i64: 1, 96>}, {pipeline_mode = #tpu.pipeline_mode<synchronous>, transform_indices = @transform_4, window_bounds = array<i64: 32, 32>}, {pipeline_mode = #tpu.pipeline_mode<synchronous>, transform_indices = @transform_5, window_bounds = array<i64: 1, 32>}, {pipeline_mode = #tpu.pipeline_mode<synchronous>, transform_indices = @transform_6, window_bounds = array<i64: 32, 128>}, {pipeline_mode = #tpu.pipeline_mode<synchronous>, transform_indices = @transform_7, window_bounds = array<i64: 1, 128>}, {pipeline_mode = #tpu.pipeline_mode<synchronous>, transform_indices = @transform_8, window_bounds = array<i64: 128, 32>}, {pipeline_mode = #tpu.pipeline_mode<synchronous>, transform_indices = @transform_9, window_bounds = array<i64: 1, 32>}, {pipeline_mode = #tpu.pipeline_mode<synchronous>, transform_indices = @transform_10, window_bounds = array<i64: 1, 32>}, {pipeline_mode = #tpu.pipeline_mode<synchronous>, transform_indices = @transform_11, window_bounds = array<i64: 1, 32>}, {pipeline_mode = #tpu.pipeline_mode<synchronous>, transform_indices = @transform_12, window_bounds = array<i64: 1, 32>}, {pipeline_mode = #tpu.pipeline_mode<synchronous>, transform_indices = @transform_13, window_bounds = array<i64: 1, 32>}, {pipeline_mode = #tpu.pipeline_mode<synchronous>, transform_indices = @transform_14, window_bounds = array<i64: 16, 32>}]} {
    %c0 = arith.constant 0 : index
    %c0_0 = arith.constant 0 : index
    %0 = vector.load %arg1[%c0, %c0_0] : memref<16x32xf32, #tpu.memory_space<vmem>>, vector<16x32xf32>
    %1 = arith.truncf %0 : vector<16x32xf32> to vector<16x32xbf16>
    %c0_1 = arith.constant 0 : index
    %c0_2 = arith.constant 0 : index
    %2 = vector.load %arg3[%c0_1, %c0_2] : memref<32x96xbf16, #tpu.memory_space<vmem>>, vector<32x96xbf16>
    %cst = arith.constant dense<0.000000e+00> : vector<16x96xf32>
    %3 = tpu.matmul %1, %2, %cst {dimension_numbers = #tpu.dot_dimension_numbers<[1], [0], [0], [1], [0, 0, 1, 1], [], []>} : vector<16x32xbf16>, vector<32x96xbf16>, vector<16x96xf32> -> vector<16x96xf32>
    %c0_3 = arith.constant 0 : index
    %c0_4 = arith.constant 0 : index
    %4 = vector.load %arg4[%c0_3, %c0_4] : memref<1x96xf32, #tpu.memory_space<vmem>>, vector<1x96xf32>
    %5 = vector.broadcast %4 : vector<1x96xf32> to vector<16x96xf32>
    %6 = arith.addf %3, %5 : vector<16x96xf32>
    %7 = vector.extract_strided_slice %6 {offsets = [0, 0], sizes = [16, 32], strides = [1, 1]} : vector<16x96xf32> to vector<16x32xf32>
    %8 = vector.shape_cast %7 : vector<16x32xf32> to vector<16x4x8xf32>
    %9 = tpu.transpose %8, [1, 0, 2] : vector<16x4x8xf32> -> vector<4x16x8xf32>
    %10 = vector.extract_strided_slice %6 {offsets = [0, 32], sizes = [16, 32], strides = [1, 1]} : vector<16x96xf32> to vector<16x32xf32>
    %11 = vector.shape_cast %10 : vector<16x32xf32> to vector<16x4x8xf32>
    %12 = tpu.transpose %11, [1, 0, 2] : vector<16x4x8xf32> -> vector<4x16x8xf32>
    %13 = vector.extract_strided_slice %6 {offsets = [0, 64], sizes = [16, 32], strides = [1, 1]} : vector<16x96xf32> to vector<16x32xf32>
    %14 = vector.shape_cast %13 : vector<16x32xf32> to vector<16x4x8xf32>
    %15 = tpu.transpose %14, [1, 0, 2] : vector<16x4x8xf32> -> vector<4x16x8xf32>
    "tpu.trace_start"() <{level = 10 : i32, message = "hmd,hnd->hmn"}> : () -> ()
    %cst_5 = arith.constant dense<0.000000e+00> : vector<4x16x16xf32>
    %16 = tpu.matmul %9, %12, %cst_5 {dimension_numbers = #tpu.dot_dimension_numbers<[2], [2], [1], [1], [0, 0, 0, 1, 1, 1], [0], [0]>} : vector<4x16x8xf32>, vector<4x16x8xf32>, vector<4x16x16xf32> -> vector<4x16x16xf32>
    "tpu.trace_stop"() : () -> ()
    %c0_6 = arith.constant 0 : index
    %c0_7 = arith.constant 0 : index
    %17 = vector.load %arg2[%c0_6, %c0_7] : memref<16x16xf32, #tpu.memory_space<vmem>>, vector<16x16xf32>
    %18 = vector.shape_cast %17 : vector<16x16xf32> to vector<1x16x16xf32>
    %19 = vector.broadcast %18 : vector<1x16x16xf32> to vector<4x16x16xf32>
    %20 = arith.addf %16, %19 : vector<4x16x16xf32>
    %cst_8 = arith.constant dense<0xFF800000> : vector<4x16xf32>
    %21 = vector.multi_reduction <maximumf>, %20, %cst_8 [2] : vector<4x16x16xf32> to vector<4x16xf32>
    %22 = vector.shape_cast %21 : vector<4x16xf32> to vector<4x16x1xf32>
    %23 = vector.broadcast %22 : vector<4x16x1xf32> to vector<4x16x16xf32>
    %24 = arith.subf %20, %23 : vector<4x16x16xf32>
    %25 = math.exp %24 : vector<4x16x16xf32>
    %cst_9 = arith.constant dense<0.000000e+00> : vector<4x16xf32>
    %26 = vector.multi_reduction <add>, %25, %cst_9 [2] : vector<4x16x16xf32> to vector<4x16xf32>
    %27 = vector.shape_cast %26 : vector<4x16xf32> to vector<4x16x1xf32>
    %28 = tpu.reciprocal %27 {approx = true} : vector<4x16x1xf32> -> vector<4x16x1xf32>
    %29 = vector.broadcast %28 : vector<4x16x1xf32> to vector<4x16x16xf32>
    %30 = arith.mulf %25, %29 : vector<4x16x16xf32>
    "tpu.trace_start"() <{level = 10 : i32, message = "hmn,hnd->hmd"}> : () -> ()
    %cst_10 = arith.constant dense<0.000000e+00> : vector<4x16x8xf32>
    %31 = tpu.matmul %30, %15, %cst_10 {dimension_numbers = #tpu.dot_dimension_numbers<[2], [1], [1], [2], [0, 0, 0, 1, 1, 2], [0], [0]>} : vector<4x16x16xf32>, vector<4x16x8xf32>, vector<4x16x8xf32> -> vector<4x16x8xf32>
    "tpu.trace_stop"() : () -> ()
    %32 = tpu.transpose %31, [1, 0, 2] : vector<4x16x8xf32> -> vector<16x4x8xf32>
    %33 = vector.shape_cast %32 : vector<16x4x8xf32> to vector<16x32xf32>
    %34 = arith.truncf %33 : vector<16x32xf32> to vector<16x32xbf16>
    %c0_11 = arith.constant 0 : index
    %c0_12 = arith.constant 0 : index
    %35 = vector.load %arg5[%c0_11, %c0_12] : memref<32x32xbf16, #tpu.memory_space<vmem>>, vector<32x32xbf16>
    %cst_13 = arith.constant dense<0.000000e+00> : vector<16x32xf32>
    %36 = tpu.matmul %34, %35, %cst_13 {dimension_numbers = #tpu.dot_dimension_numbers<[1], [0], [0], [1], [0, 0, 1, 1], [], []>} : vector<16x32xbf16>, vector<32x32xbf16>, vector<16x32xf32> -> vector<16x32xf32>
    %c0_14 = arith.constant 0 : index
    %c0_15 = arith.constant 0 : index
    %37 = vector.load %arg6[%c0_14, %c0_15] : memref<1x32xf32, #tpu.memory_space<vmem>>, vector<1x32xf32>
    %38 = vector.broadcast %37 : vector<1x32xf32> to vector<16x32xf32>
    %39 = arith.addf %36, %38 : vector<16x32xf32>
    %40 = arith.addf %0, %39 : vector<16x32xf32>
    %c0_16 = arith.constant 0 : index
    %c0_17 = arith.constant 0 : index
    %41 = vector.load %arg11[%c0_16, %c0_17] : memref<1x32xf32, #tpu.memory_space<vmem>>, vector<1x32xf32>
    %c0_18 = arith.constant 0 : index
    %c0_19 = arith.constant 0 : index
    %42 = vector.load %arg12[%c0_18, %c0_19] : memref<1x32xf32, #tpu.memory_space<vmem>>, vector<1x32xf32>
    %cst_20 = arith.constant dense<0.000000e+00> : vector<16xf32>
    %43 = vector.multi_reduction <add>, %40, %cst_20 [1] : vector<16x32xf32> to vector<16xf32>
    %44 = vector.shape_cast %43 : vector<16xf32> to vector<16x1xf32>
    %cst_21 = arith.constant 3.200000e+01 : f32
    %45 = vector.broadcast %cst_21 : f32 to vector<16x1xf32>
    %46 = arith.divf %44, %45 : vector<16x1xf32>
    %47 = vector.broadcast %46 : vector<16x1xf32> to vector<16x32xf32>
    %48 = arith.subf %40, %47 : vector<16x32xf32>
    %49 = arith.mulf %48, %48 : vector<16x32xf32>
    %cst_22 = arith.constant dense<0.000000e+00> : vector<16xf32>
    %50 = vector.multi_reduction <add>, %49, %cst_22 [1] : vector<16x32xf32> to vector<16xf32>
    %51 = vector.shape_cast %50 : vector<16xf32> to vector<16x1xf32>
    %cst_23 = arith.constant 3.200000e+01 : f32
    %52 = vector.broadcast %cst_23 : f32 to vector<16x1xf32>
    %53 = arith.divf %51, %52 : vector<16x1xf32>
    %54 = vector.broadcast %46 : vector<16x1xf32> to vector<16x32xf32>
    %55 = arith.subf %40, %54 : vector<16x32xf32>
    %cst_24 = arith.constant 9.99999974E-6 : f32
    %56 = vector.broadcast %cst_24 : f32 to vector<16x1xf32>
    %57 = arith.addf %53, %56 : vector<16x1xf32>
    %58 = math.rsqrt %57 : vector<16x1xf32>
    %59 = vector.broadcast %58 : vector<16x1xf32> to vector<16x32xf32>
    %60 = arith.mulf %55, %59 : vector<16x32xf32>
    %61 = vector.broadcast %41 : vector<1x32xf32> to vector<16x32xf32>
    %62 = arith.mulf %60, %61 : vector<16x32xf32>
    %63 = vector.broadcast %42 : vector<1x32xf32> to vector<16x32xf32>
    %64 = arith.addf %62, %63 : vector<16x32xf32>
    %65 = arith.truncf %64 : vector<16x32xf32> to vector<16x32xbf16>
    %c0_25 = arith.constant 0 : index
    %c0_26 = arith.constant 0 : index
    %66 = vector.load %arg7[%c0_25, %c0_26] : memref<32x128xbf16, #tpu.memory_space<vmem>>, vector<32x128xbf16>
    %cst_27 = arith.constant dense<0.000000e+00> : vector<16x128xf32>
    %67 = tpu.matmul %65, %66, %cst_27 {dimension_numbers = #tpu.dot_dimension_numbers<[1], [0], [0], [1], [0, 0, 1, 1], [], []>} : vector<16x32xbf16>, vector<32x128xbf16>, vector<16x128xf32> -> vector<16x128xf32>
    %c0_28 = arith.constant 0 : index
    %c0_29 = arith.constant 0 : index
    %68 = vector.load %arg8[%c0_28, %c0_29] : memref<1x128xf32, #tpu.memory_space<vmem>>, vector<1x128xf32>
    %69 = vector.broadcast %68 : vector<1x128xf32> to vector<16x128xf32>
    %70 = arith.addf %67, %69 : vector<16x128xf32>
    %cst_30 = arith.constant 0.000000e+00 : f32
    %71 = vector.broadcast %cst_30 : f32 to vector<16x128xf32>
    %72 = arith.maximumf %70, %71 : vector<16x128xf32>
    %73 = arith.truncf %72 : vector<16x128xf32> to vector<16x128xbf16>
    %c0_31 = arith.constant 0 : index
    %c0_32 = arith.constant 0 : index
    %74 = vector.load %arg9[%c0_31, %c0_32] : memref<128x32xbf16, #tpu.memory_space<vmem>>, vector<128x32xbf16>
    %cst_33 = arith.constant dense<0.000000e+00> : vector<16x32xf32>
    %75 = tpu.matmul %73, %74, %cst_33 {dimension_numbers = #tpu.dot_dimension_numbers<[1], [0], [0], [1], [0, 0, 1, 1], [], []>} : vector<16x128xbf16>, vector<128x32xbf16>, vector<16x32xf32> -> vector<16x32xf32>
    %c0_34 = arith.constant 0 : index
    %c0_35 = arith.constant 0 : index
    %76 = vector.load %arg10[%c0_34, %c0_35] : memref<1x32xf32, #tpu.memory_space<vmem>>, vector<1x32xf32>
    %77 = vector.broadcast %76 : vector<1x32xf32> to vector<16x32xf32>
    %78 = arith.addf %75, %77 : vector<16x32xf32>
    %79 = arith.addf %64, %78 : vector<16x32xf32>
    %c0_36 = arith.constant 0 : index
    %c0_37 = arith.constant 0 : index
    %80 = vector.load %arg13[%c0_36, %c0_37] : memref<1x32xf32, #tpu.memory_space<vmem>>, vector<1x32xf32>
    %c0_38 = arith.constant 0 : index
    %c0_39 = arith.constant 0 : index
    %81 = vector.load %arg14[%c0_38, %c0_39] : memref<1x32xf32, #tpu.memory_space<vmem>>, vector<1x32xf32>
    %cst_40 = arith.constant dense<0.000000e+00> : vector<16xf32>
    %82 = vector.multi_reduction <add>, %79, %cst_40 [1] : vector<16x32xf32> to vector<16xf32>
    %83 = vector.shape_cast %82 : vector<16xf32> to vector<16x1xf32>
    %cst_41 = arith.constant 3.200000e+01 : f32
    %84 = vector.broadcast %cst_41 : f32 to vector<16x1xf32>
    %85 = arith.divf %83, %84 : vector<16x1xf32>
    %86 = vector.broadcast %85 : vector<16x1xf32> to vector<16x32xf32>
    %87 = arith.subf %79, %86 : vector<16x32xf32>
    %88 = arith.mulf %87, %87 : vector<16x32xf32>
    %cst_42 = arith.constant dense<0.000000e+00> : vector<16xf32>
    %89 = vector.multi_reduction <add>, %88, %cst_42 [1] : vector<16x32xf32> to vector<16xf32>
    %90 = vector.shape_cast %89 : vector<16xf32> to vector<16x1xf32>
    %cst_43 = arith.constant 3.200000e+01 : f32
    %91 = vector.broadcast %cst_43 : f32 to vector<16x1xf32>
    %92 = arith.divf %90, %91 : vector<16x1xf32>
    %93 = vector.broadcast %85 : vector<16x1xf32> to vector<16x32xf32>
    %94 = arith.subf %79, %93 : vector<16x32xf32>
    %cst_44 = arith.constant 9.99999974E-6 : f32
    %95 = vector.broadcast %cst_44 : f32 to vector<16x1xf32>
    %96 = arith.addf %92, %95 : vector<16x1xf32>
    %97 = math.rsqrt %96 : vector<16x1xf32>
    %98 = vector.broadcast %97 : vector<16x1xf32> to vector<16x32xf32>
    %99 = arith.mulf %94, %98 : vector<16x32xf32>
    %100 = vector.broadcast %80 : vector<1x32xf32> to vector<16x32xf32>
    %101 = arith.mulf %99, %100 : vector<16x32xf32>
    %102 = vector.broadcast %81 : vector<1x32xf32> to vector<16x32xf32>
    %103 = arith.addf %101, %102 : vector<16x32xf32>
    %c0_45 = arith.constant 0 : index
    %c0_46 = arith.constant 0 : index
    %104 = vector.load %arg15[%c0_45, %c0_46] : memref<16x32xf32, #tpu.memory_space<vmem>>, vector<16x32xf32>
    tpu.vector_store %arg15[%c0_45, %c0_46], %103 {strides = array<i32>} : memref<16x32xf32, #tpu.memory_space<vmem>>, vector<16x32xf32>,
    return
  }
  func.func @transform_0(%arg0: i32) -> (i32, i32) {
    %c0_i32 = arith.constant 0 : i32
    %c0_i32_0 = arith.constant 0 : i32
    %c0_i32_1 = arith.constant 0 : i32
    return %c0_i32, %c0_i32_0 : i32, i32
  }
  func.func @transform_1(%arg0: i32) -> (i32, i32) {
    %c0_i32 = arith.constant 0 : i32
    %c0_i32_0 = arith.constant 0 : i32
    %c0_i32_1 = arith.constant 0 : i32
    return %c0_i32, %c0_i32_0 : i32, i32
  }
  func.func @transform_2(%arg0: i32) -> (i32, i32) {
    %c0_i32 = arith.constant 0 : i32
    %c0_i32_0 = arith.constant 0 : i32
    %c0_i32_1 = arith.constant 0 : i32
    return %c0_i32, %c0_i32_0 : i32, i32
  }
  func.func @transform_3(%arg0: i32) -> (i32, i32) {
    %c0_i32 = arith.constant 0 : i32
    %c0_i32_0 = arith.constant 0 : i32
    %c0_i32_1 = arith.constant 0 : i32
    return %c0_i32, %c0_i32_0 : i32, i32
  }
  func.func @transform_4(%arg0: i32) -> (i32, i32) {
    %c0_i32 = arith.constant 0 : i32
    %c0_i32_0 = arith.constant 0 : i32
    %c0_i32_1 = arith.constant 0 : i32
    return %c0_i32, %c0_i32_0 : i32, i32
  }
  func.func @transform_5(%arg0: i32) -> (i32, i32) {
    %c0_i32 = arith.constant 0 : i32
    %c0_i32_0 = arith.constant 0 : i32
    %c0_i32_1 = arith.constant 0 : i32
    return %c0_i32, %c0_i32_0 : i32, i32
  }
  func.func @transform_6(%arg0: i32) -> (i32, i32) {
    %c0_i32 = arith.constant 0 : i32
    %c0_i32_0 = arith.constant 0 : i32
    %c0_i32_1 = arith.constant 0 : i32
    return %c0_i32, %c0_i32_0 : i32, i32
  }
  func.func @transform_7(%arg0: i32) -> (i32, i32) {
    %c0_i32 = arith.constant 0 : i32
    %c0_i32_0 = arith.constant 0 : i32
    %c0_i32_1 = arith.constant 0 : i32
    return %c0_i32, %c0_i32_0 : i32, i32
  }
  func.func @transform_8(%arg0: i32) -> (i32, i32) {
    %c0_i32 = arith.constant 0 : i32
    %c0_i32_0 = arith.constant 0 : i32
    %c0_i32_1 = arith.constant 0 : i32
    return %c0_i32, %c0_i32_0 : i32, i32
  }
  func.func @transform_9(%arg0: i32) -> (i32, i32) {
    %c0_i32 = arith.constant 0 : i32
    %c0_i32_0 = arith.constant 0 : i32
    %c0_i32_1 = arith.constant 0 : i32
    return %c0_i32, %c0_i32_0 : i32, i32
  }
  func.func @transform_10(%arg0: i32) -> (i32, i32) {
    %c0_i32 = arith.constant 0 : i32
    %c0_i32_0 = arith.constant 0 : i32
    %c0_i32_1 = arith.constant 0 : i32
    return %c0_i32, %c0_i32_0 : i32, i32
  }
  func.func @transform_11(%arg0: i32) -> (i32, i32) {
    %c0_i32 = arith.constant 0 : i32
    %c0_i32_0 = arith.constant 0 : i32
    %c0_i32_1 = arith.constant 0 : i32
    return %c0_i32, %c0_i32_0 : i32, i32
  }
  func.func @transform_12(%arg0: i32) -> (i32, i32) {
    %c0_i32 = arith.constant 0 : i32
    %c0_i32_0 = arith.constant 0 : i32
    %c0_i32_1 = arith.constant 0 : i32
    return %c0_i32, %c0_i32_0 : i32, i32
  }
  func.func @transform_13(%arg0: i32) -> (i32, i32) {
    %c0_i32 = arith.constant 0 : i32
    %c0_i32_0 = arith.constant 0 : i32
    %c0_i32_1 = arith.constant 0 : i32
    return %c0_i32, %c0_i32_0 : i32, i32
  }
  func.func @transform_14(%arg0: i32) -> (i32, i32) {
    %c0_i32 = arith.constant 0 : i32
    %c0_i32_0 = arith.constant 0 : i32
    %c0_i32_1 = arith.constant 0 : i32
    return %c0_i32, %c0_i32_0 : i32, i32
  }
}

</mosaic_0001>

<llo_original>
// kernel: tpu_custom_call.1
$region0: #{tpu_custom_call.1}
  #allocation0 [shape = 'u32[]', space=smem, size = 0x4, offset = 0x4, fixed_abs, tag = 'smem constant byte address 0x4 - core index']
  #allocation1 [shape = 'u32[144,128]{1,0:T(1,128)}', space=vmem, size = 0x12000, scoped, tag = 'internal scratch']
  %s0 = inlined_call_operand.vmem [shape: f32[16,32], index: 0, kind: input, shape index: {}]
  %s1 = inlined_call_operand.vmem [shape: f32[16,16], index: 1, kind: input, shape index: {}]
  %s2 = inlined_call_operand.vmem [shape: bf16[32,96], index: 2, kind: input, shape index: {}]
  %s3 = inlined_call_operand.vmem [shape: f32[1,96], index: 3, kind: input, shape index: {}]
  %s4 = inlined_call_operand.vmem [shape: bf16[32,32], index: 4, kind: input, shape index: {}]
  %s5 = inlined_call_operand.vmem [shape: f32[1,32], index: 5, kind: input, shape index: {}]
  %s6 = inlined_call_operand.vmem [shape: bf16[32,128], index: 6, kind: input, shape index: {}]
  %s7 = inlined_call_operand.vmem [shape: f32[1,128], index: 7, kind: input, shape index: {}]
  %s8 = inlined_call_operand.vmem [shape: bf16[128,32], index: 8, kind: input, shape index: {}]
  %s9 = inlined_call_operand.vmem [shape: f32[1,32], index: 9, kind: input, shape index: {}]
  %s10 = inlined_call_operand.vmem [shape: f32[1,32], index: 10, kind: input, shape index: {}]
  %s11 = inlined_call_operand.vmem [shape: f32[1,32], index: 11, kind: input, shape index: {}]
  %s12 = inlined_call_operand.vmem [shape: f32[1,32], index: 12, kind: input, shape index: {}]
  %s13 = inlined_call_operand.vmem [shape: f32[1,32], index: 13, kind: input, shape index: {}]
  %s14 = inlined_call_operand.hbm [shape: f32[16,32], index: 14, kind: output, shape index: {}]
  %s15 = sld [smem:[#allocation0]]
  $region66: #{tpu_custom_call.1} parent=0
    _
  %s17 = ssub.s32 1, %s15
  %s18 = scalar_select 0, %s17, %s15
  $region1: #{tpu_custom_call.1} parent=0
    #allocation2 [shape = 'u8[8192]{0}', space=vmem, size = 0x2000, scoped, tag = 'output window, operand 0, single buffered']
    #allocation3 [shape = 's32[1]{0}', space=sflag, size = 0x4, scoped, tag = 'scoped memory for tpu_custom_call.1']
    %19 = vsyncpa [#allocation3], 0
    // Predicated region
    $region2: #{tpu_custom_call.1} parent=1 // pred_check
      _
    $region3: #{tpu_custom_call.1} parent=1 // pred_check_branch
      %21 = sbr.rel (0) target = $region5
    $region4: #{tpu_custom_call.1} parent=1 // pred_region
      _
    $region5: #{tpu_custom_call.1} parent=1 // pred_fallthru
      _
    // Predicated region
    $region6: #{tpu_custom_call.1} parent=1 // pred_check
      _
    $region7: #{tpu_custom_call.1} parent=1 // pred_check_branch
      %23 = sbr.rel (0) target = $region9
    $region8: #{tpu_custom_call.1} parent=1 // pred_region
      _
    $region9: #{tpu_custom_call.1} parent=1 // pred_fallthru
      _
    // Predicated region
    $region10: #{tpu_custom_call.1} parent=1 // pred_check
      _
    $region11: #{tpu_custom_call.1} parent=1 // pred_check_branch
      %25 = sbr.rel (0) target = $region13
    $region12: #{tpu_custom_call.1} parent=1 // pred_region
      _
    $region13: #{tpu_custom_call.1} parent=1 // pred_fallthru
      _
    // Predicated region
    $region14: #{tpu_custom_call.1} parent=1 // pred_check
      _
    $region15: #{tpu_custom_call.1} parent=1 // pred_check_branch
      %27 = sbr.rel (0) target = $region17
    $region16: #{tpu_custom_call.1} parent=1 // pred_region
      _
    $region17: #{tpu_custom_call.1} parent=1 // pred_fallthru
      _
    // Predicated region
    $region18: #{tpu_custom_call.1} parent=1 // pred_check
      _
    $region19: #{tpu_custom_call.1} parent=1 // pred_check_branch
      %29 = sbr.rel (0) target = $region21
    $region20: #{tpu_custom_call.1} parent=1 // pred_region
      _
    $region21: #{tpu_custom_call.1} parent=1 // pred_fallthru
      _
    // Predicated region
    $region22: #{tpu_custom_call.1} parent=1 // pred_check
      _
    $region23: #{tpu_custom_call.1} parent=1 // pred_check_branch
      %31 = sbr.rel (0) target = $region25
    $region24: #{tpu_custom_call.1} parent=1 // pred_region
      _
    $region25: #{tpu_custom_call.1} parent=1 // pred_fallthru
      _
    // Predicated region
    $region26: #{tpu_custom_call.1} parent=1 // pred_check
      _
    $region27: #{tpu_custom_call.1} parent=1 // pred_check_branch
      %33 = sbr.rel (0) target = $region29
    $region28: #{tpu_custom_call.1} parent=1 // pred_region
      _
    $region29: #{tpu_custom_call.1} parent=1 // pred_fallthru
      _
    // Predicated region
    $region30: #{tpu_custom_call.1} parent=1 // pred_check
      _
    $region31: #{tpu_custom_call.1} parent=1 // pred_check_branch
      %35 = sbr.rel (0) target = $region33
    $region32: #{tpu_custom_call.1} parent=1 // pred_region
      _
    $region33: #{tpu_custom_call.1} parent=1 // pred_fallthru
      _
    // Predicated region
    $region34: #{tpu_custom_call.1} parent=1 // pred_check
      _
    $region35: #{tpu_custom_call.1} parent=1 // pred_check_branch
      %37 = sbr.rel (0) target = $region37
    $region36: #{tpu_custom_call.1} parent=1 // pred_region
      _
    $region37: #{tpu_custom_call.1} parent=1 // pred_fallthru
      _
    // Predicated region
    $region38: #{tpu_custom_call.1} parent=1 // pred_check
      _
    $region39: #{tpu_custom_call.1} parent=1 // pred_check_branch
      %39 = sbr.rel (0) target = $region41
    $region40: #{tpu_custom_call.1} parent=1 // pred_region
      _
    $region41: #{tpu_custom_call.1} parent=1 // pred_fallthru
      _
    // Predicated region
    $region42: #{tpu_custom_call.1} parent=1 // pred_check
      _
    $region43: #{tpu_custom_call.1} parent=1 // pred_check_branch
      %41 = sbr.rel (0) target = $region45
    $region44: #{tpu_custom_call.1} parent=1 // pred_region
      _
    $region45: #{tpu_custom_call.1} parent=1 // pred_fallthru
      _
    // Predicated region
    $region46: #{tpu_custom_call.1} parent=1 // pred_check
      _
    $region47: #{tpu_custom_call.1} parent=1 // pred_check_branch
      %43 = sbr.rel (0) target = $region49
    $region48: #{tpu_custom_call.1} parent=1 // pred_region
      _
    $region49: #{tpu_custom_call.1} parent=1 // pred_fallthru
      _
    // Predicated region
    $region50: #{tpu_custom_call.1} parent=1 // pred_check
      _
    $region51: #{tpu_custom_call.1} parent=1 // pred_check_branch
      %45 = sbr.rel (0) target = $region53
    $region52: #{tpu_custom_call.1} parent=1 // pred_region
      _
    $region53: #{tpu_custom_call.1} parent=1 // pred_fallthru
      _
    // Predicated region
    $region54: #{tpu_custom_call.1} parent=1 // pred_check
      _
    $region55: #{tpu_custom_call.1} parent=1 // pred_check_branch
      %47 = sbr.rel (0) target = $region57
    $region56: #{tpu_custom_call.1} parent=1 // pred_region
      _
    $region57: #{tpu_custom_call.1} parent=1 // pred_fallthru
      _
    %v49 = vld [vmem:[%s0] sm:$0xff]
    %v50 = vld [vmem:[%s0 + $0x8] sm:$0xff]
    %v51 = vpack.c.bf16 %v50, %v49
    %v52 = vld [vmem:[%s2] sm:$0xf]
    %v53 = vld [vmem:[%s2 + $0x4] sm:$0xf]
    %v54 = vld [vmem:[%s2 + $0x8] sm:$0xf]
    %v55 = vld [vmem:[%s2 + $0xc] sm:$0xf]
    %v56 = vld [vmem:[%s3] sm:$0x1]
    %v58 = vlaneseq
    %v59 = vshrl.u32 %v58, 7
    %v60 = vsub.s32 0, %v59
    %v61 = vrot.slane %v56, %v60
    %v67 = vunpack.c.l.b16 %v52
    %v68 = vunpack.c.l.b16 %v53
    %v69 = vunpack.c.l.b16 %v54
    %v70 = vunpack.c.l.b16 %v55
    %v71 = vpack.c.b16 %v68, %v67
    %v72 = vpack.c.b16 %v70, %v69
    %vm75 = vcmask 261120
    %v77 = vsel %vm75, %v51, 0
    %79 = vmatprep.subr.bf16.mxu0 0
    %80 = vmatpush1.bf16.msra.mxu0 %v71
    %81 = vmatprep.subr.bf16.mxu0 0
    %82 = vmatpush1.bf16.msra.mxu0 %v72
    %83 = vmatprep.subr.bf16.mxu0 0
    %84 = vmatpush1.bf16.msra.mxu0 0
    %85 = vmatprep.subr.bf16.mxu0 0
    %86 = vmatpush1.bf16.msra.mxu0 0
    %87 = vmatprep.subr.bf16.mxu0 0
    %88 = vmatpush1.bf16.msra.mxu0 0
    %89 = vmatprep.subr.bf16.mxu0 0
    %90 = vmatpush1.bf16.msra.mxu0 0
    %91 = vmatprep.subr.bf16.mxu0 0
    %92 = vmatpush1.bf16.msra.mxu0 0
    %93 = vmatprep.subr.bf16.mxu0 0
    %94 = vmatpush1.bf16.msra.mxu0 0
    %95 = vmatprep.subr.bf16.mxu0 0
    %96 = vmatpush1.bf16.msra.mxu0 0
    %97 = vmatprep.subr.bf16.mxu0 0
    %98 = vmatpush1.bf16.msra.mxu0 0
    %99 = vmatprep.subr.bf16.mxu0 0
    %100 = vmatpush1.bf16.msra.mxu0 0
    %101 = vmatprep.subr.bf16.mxu0 0
    %102 = vmatpush1.bf16.msra.mxu0 0
    %103 = vmatprep.subr.bf16.mxu0 0
    %104 = vmatpush1.bf16.msra.mxu0 0
    %105 = vmatprep.subr.bf16.mxu0 0
    %106 = vmatpush1.bf16.msra.mxu0 0
    %107 = vmatprep.subr.bf16.mxu0 0
    %108 = vmatpush1.bf16.msra.mxu0 0
    %109 = vmatprep.subr.bf16.mxu0 0
    %110 = vmatpush1.bf16.msra.mxu0 0
    %111 = vmatprep.mubr.bf16.mxu0 0
    %112 = vmatmul.mubr.bf16.gmra.mrb[0].mxu0 %v77
    %v113 = vpop.f32.mrb[0].mxu0
    %v114 = vadd.f32 %v61, %v113
    %v115 = vpop.f32.mrb[0].mxu0
    %v116 = vpop.f32.mrb[0].mxu0
    %v117 = vadd.f32 %v61, %v116
    %v118 = vpop.f32.mrb[0].mxu0
    %119 = vdwg.mxu0
    %122 = vrot.lane.b32.xlu0 %v114, 120
    %v123 = vpop.permute.xlu0 %122
    %124 = vrot.lane.b32.xlu0 %v117, 120
    %v125 = vpop.permute.xlu0 %124
    %128 = vrot.lane.b32.xlu0 %v114, 112
    %v129 = vpop.permute.xlu0 %128
    %130 = vrot.lane.b32.xlu0 %v117, 112
    %v131 = vpop.permute.xlu0 %130
    %134 = vrot.lane.b32.xlu0 %v114, 104
    %v135 = vpop.permute.xlu0 %134
    %136 = vrot.lane.b32.xlu0 %v117, 104
    %v137 = vpop.permute.xlu0 %136
    %v140 = vcombine.low %v114, %v129
    %v141 = vcombine.high %v114, %v129
    %v143 = vunpack.c.l.s4 1983009808
    %v144 = vunpack.c.0.s8 %v143
    %v145 = vlaneseq
    %v146 = vshrl.u32 %v145, 7
    %v147 = vsub.s32 %v144, %v146
    %v148 = vrot.slane %v140, %v147
    %v150 = vunpack.c.l.s4 1983009808
    %v151 = vunpack.c.0.s8 %v150
    %v152 = vlaneseq
    %v153 = vshrl.u32 %v152, 7
    %v154 = vsub.s32 %v151, %v153
    %v155 = vrot.slane %v141, %v154
    %v156 = vcombine.low %v123, %v135
    %v157 = vcombine.high %v123, %v135
    %v159 = vunpack.c.l.s4 1983009808
    %v160 = vunpack.c.0.s8 %v159
    %v161 = vlaneseq
    %v162 = vshrl.u32 %v161, 7
    %v163 = vsub.s32 %v160, %v162
    %v164 = vrot.slane %v156, %v163
    %v166 = vunpack.c.l.s4 1983009808
    %v167 = vunpack.c.0.s8 %v166
    %v168 = vlaneseq
    %v169 = vshrl.u32 %v168, 7
    %v170 = vsub.s32 %v167, %v169
    %v171 = vrot.slane %v157, %v170
    %v172 = vcombine.low %v148, %v164
    %v173 = vcombine.high %v148, %v164
    %v175 = vunpack.c.l.s4 1934713408
    %v176 = vunpack.c.0.s8 %v175
    %v177 = vlaneseq
    %v178 = vshrl.u32 %v177, 7
    %v179 = vsub.s32 %v176, %v178
    %v180 = vrot.slane %v172, %v179
    %v182 = vunpack.c.l.s4 1934713408
    %v183 = vunpack.c.0.s8 %v182
    %v184 = vlaneseq
    %v185 = vshrl.u32 %v184, 7
    %v186 = vsub.s32 %v183, %v185
    %v187 = vrot.slane %v173, %v186
    %v188 = vcombine.low %v155, %v171
    %v189 = vcombine.high %v155, %v171
    %v191 = vunpack.c.l.s4 1934713408
    %v192 = vunpack.c.0.s8 %v191
    %v193 = vlaneseq
    %v194 = vshrl.u32 %v193, 7
    %v195 = vsub.s32 %v192, %v194
    %v196 = vrot.slane %v188, %v195
    %v198 = vunpack.c.l.s4 1934713408
    %v199 = vunpack.c.0.s8 %v198
    %v200 = vlaneseq
    %v201 = vshrl.u32 %v200, 7
    %v202 = vsub.s32 %v199, %v201
    %v203 = vrot.slane %v189, %v202
    %v204 = vcombine.high %v180, 0.0
    %v205 = vcombine.high %v187, 0.0
    %v206 = vcombine.high %v196, 0.0
    %v207 = vcombine.high %v203, 0.0
    %v208 = vcombine.low %v117, %v131
    %v209 = vcombine.high %v117, %v131
    %v211 = vunpack.c.l.s4 1983009808
    %v212 = vunpack.c.0.s8 %v211
    %v213 = vlaneseq
    %v214 = vshrl.u32 %v213, 7
    %v215 = vsub.s32 %v212, %v214
    %v216 = vrot.slane %v208, %v215
    %v218 = vunpack.c.l.s4 1983009808
    %v219 = vunpack.c.0.s8 %v218
    %v220 = vlaneseq
    %v221 = vshrl.u32 %v220, 7
    %v222 = vsub.s32 %v219, %v221
    %v223 = vrot.slane %v209, %v222
    %v224 = vcombine.low %v125, %v137
    %v225 = vcombine.high %v125, %v137
    %v227 = vunpack.c.l.s4 1983009808
    %v228 = vunpack.c.0.s8 %v227
    %v229 = vlaneseq
    %v230 = vshrl.u32 %v229, 7
    %v231 = vsub.s32 %v228, %v230
    %v232 = vrot.slane %v224, %v231
    %v234 = vunpack.c.l.s4 1983009808
    %v235 = vunpack.c.0.s8 %v234
    %v236 = vlaneseq
    %v237 = vshrl.u32 %v236, 7
    %v238 = vsub.s32 %v235, %v237
    %v239 = vrot.slane %v225, %v238
    %v240 = vcombine.low %v216, %v232
    %v241 = vcombine.high %v216, %v232
    %v243 = vunpack.c.l.s4 1934713408
    %v244 = vunpack.c.0.s8 %v243
    %v245 = vlaneseq
    %v246 = vshrl.u32 %v245, 7
    %v247 = vsub.s32 %v244, %v246
    %v248 = vrot.slane %v240, %v247
    %v250 = vunpack.c.l.s4 1934713408
    %v251 = vunpack.c.0.s8 %v250
    %v252 = vlaneseq
    %v253 = vshrl.u32 %v252, 7
    %v254 = vsub.s32 %v251, %v253
    %v255 = vrot.slane %v241, %v254
    %v256 = vcombine.low %v223, %v239
    %v257 = vcombine.high %v223, %v239
    %v259 = vunpack.c.l.s4 1934713408
    %v260 = vunpack.c.0.s8 %v259
    %v261 = vlaneseq
    %v262 = vshrl.u32 %v261, 7
    %v263 = vsub.s32 %v260, %v262
    %v264 = vrot.slane %v256, %v263
    %v266 = vunpack.c.l.s4 1934713408
    %v267 = vunpack.c.0.s8 %v266
    %v268 = vlaneseq
    %v269 = vshrl.u32 %v268, 7
    %v270 = vsub.s32 %v267, %v269
    %v271 = vrot.slane %v257, %v270
    %v272 = vcombine.high %v248, 0.0
    %v273 = vcombine.high %v255, 0.0
    %v274 = vcombine.high %v264, 0.0
    %v275 = vcombine.high %v271, 0.0
    %v276 = vcombine.low %v180, %v187
    %v278 = vunpack.c.l.s4 1983009808
    %v279 = vunpack.c.0.s8 %v278
    %v280 = vlaneseq
    %v281 = vshrl.u32 %v280, 7
    %v282 = vsub.s32 %v279, %v281
    %v283 = vrot.slane %v276, %v282
    %v284 = vcombine.low %v204, %v205
    %v286 = vunpack.c.l.s4 1983009808
    %v287 = vunpack.c.0.s8 %v286
    %v288 = vlaneseq
    %v289 = vshrl.u32 %v288, 7
    %v290 = vsub.s32 %v287, %v289
    %v291 = vrot.slane %v284, %v290
    %v292 = vcombine.low %v196, %v203
    %v294 = vunpack.c.l.s4 1983009808
    %v295 = vunpack.c.0.s8 %v294
    %v296 = vlaneseq
    %v297 = vshrl.u32 %v296, 7
    %v298 = vsub.s32 %v295, %v297
    %v299 = vrot.slane %v292, %v298
    %v300 = vcombine.low %v206, %v207
    %v302 = vunpack.c.l.s4 1983009808
    %v303 = vunpack.c.0.s8 %v302
    %v304 = vlaneseq
    %v305 = vshrl.u32 %v304, 7
    %v306 = vsub.s32 %v303, %v305
    %v307 = vrot.slane %v300, %v306
    %v308 = vcombine.low %v283, %v291
    %v309 = vcombine.high %v283, %v291
    %v311 = vunpack.c.l.s4 1934713408
    %v312 = vunpack.c.0.s8 %v311
    %v313 = vlaneseq
    %v314 = vshrl.u32 %v313, 7
    %v315 = vsub.s32 %v312, %v314
    %v316 = vrot.slane %v308, %v315
    %v318 = vunpack.c.l.s4 1934713408
    %v319 = vunpack.c.0.s8 %v318
    %v320 = vlaneseq
    %v321 = vshrl.u32 %v320, 7
    %v322 = vsub.s32 %v319, %v321
    %v323 = vrot.slane %v309, %v322
    %v324 = vcombine.low %v299, %v307
    %v325 = vcombine.high %v299, %v307
    %v327 = vunpack.c.l.s4 1934713408
    %v328 = vunpack.c.0.s8 %v327
    %v329 = vlaneseq
    %v330 = vshrl.u32 %v329, 7
    %v331 = vsub.s32 %v328, %v330
    %v332 = vrot.slane %v324, %v331
    %v334 = vunpack.c.l.s4 1934713408
    %v335 = vunpack.c.0.s8 %v334
    %v336 = vlaneseq
    %v337 = vshrl.u32 %v336, 7
    %v338 = vsub.s32 %v335, %v337
    %v339 = vrot.slane %v325, %v338
    %v340 = vcombine.low %v316, %v332
    %v341 = vcombine.high %v316, %v332
    %v342 = vcombine.low %v323, %v339
    %v343 = vcombine.high %v323, %v339
    %v344 = vcombine.low %v248, %v255
    %v346 = vunpack.c.l.s4 1983009808
    %v347 = vunpack.c.0.s8 %v346
    %v348 = vlaneseq
    %v349 = vshrl.u32 %v348, 7
    %v350 = vsub.s32 %v347, %v349
    %v351 = vrot.slane %v344, %v350
    %v352 = vcombine.low %v272, %v273
    %v354 = vunpack.c.l.s4 1983009808
    %v355 = vunpack.c.0.s8 %v354
    %v356 = vlaneseq
    %v357 = vshrl.u32 %v356, 7
    %v358 = vsub.s32 %v355, %v357
    %v359 = vrot.slane %v352, %v358
    %v360 = vcombine.low %v264, %v271
    %v362 = vunpack.c.l.s4 1983009808
    %v363 = vunpack.c.0.s8 %v362
    %v364 = vlaneseq
    %v365 = vshrl.u32 %v364, 7
    %v366 = vsub.s32 %v363, %v365
    %v367 = vrot.slane %v360, %v366
    %v368 = vcombine.low %v274, %v275
    %v370 = vunpack.c.l.s4 1983009808
    %v371 = vunpack.c.0.s8 %v370
    %v372 = vlaneseq
    %v373 = vshrl.u32 %v372, 7
    %v374 = vsub.s32 %v371, %v373
    %v375 = vrot.slane %v368, %v374
    %v376 = vcombine.low %v351, %v359
    %v377 = vcombine.high %v351, %v359
    %v379 = vunpack.c.l.s4 1934713408
    %v380 = vunpack.c.0.s8 %v379
    %v381 = vlaneseq
    %v382 = vshrl.u32 %v381, 7
    %v383 = vsub.s32 %v380, %v382
    %v384 = vrot.slane %v376, %v383
    %v386 = vunpack.c.l.s4 1934713408
    %v387 = vunpack.c.0.s8 %v386
    %v388 = vlaneseq
    %v389 = vshrl.u32 %v388, 7
    %v390 = vsub.s32 %v387, %v389
    %v391 = vrot.slane %v377, %v390
    %v392 = vcombine.low %v367, %v375
    %v393 = vcombine.high %v367, %v375
    %v395 = vunpack.c.l.s4 1934713408
    %v396 = vunpack.c.0.s8 %v395
    %v397 = vlaneseq
    %v398 = vshrl.u32 %v397, 7
    %v399 = vsub.s32 %v396, %v398
    %v400 = vrot.slane %v392, %v399
    %v402 = vunpack.c.l.s4 1934713408
    %v403 = vunpack.c.0.s8 %v402
    %v404 = vlaneseq
    %v405 = vshrl.u32 %v404, 7
    %v406 = vsub.s32 %v403, %v405
    %v407 = vrot.slane %v393, %v406
    %v408 = vcombine.low %v384, %v400
    %v409 = vcombine.high %v384, %v400
    %v410 = vcombine.low %v391, %v407
    %v411 = vcombine.high %v391, %v407
    %412 = vrot.lane.b32.xlu0 %v114, 96
    %v413 = vpop.permute.xlu0 %412
    %414 = vrot.lane.b32.xlu0 %v117, 96
    %v415 = vpop.permute.xlu0 %414
    %416 = vrot.lane.b32.xlu0 %v123, 96
    %v417 = vpop.permute.xlu0 %416
    %418 = vrot.lane.b32.xlu0 %v125, 96
    %v419 = vpop.permute.xlu0 %418
    %420 = vrot.lane.b32.xlu0 %v129, 96
    %v421 = vpop.permute.xlu0 %420
    %422 = vrot.lane.b32.xlu0 %v131, 96
    %v423 = vpop.permute.xlu0 %422
    %424 = vrot.lane.b32.xlu0 %v135, 96
    %v425 = vpop.permute.xlu0 %424
    %426 = vrot.lane.b32.xlu0 %v137, 96
    %v427 = vpop.permute.xlu0 %426
    %v436 = vcombine.low %v413, %v421
    %v437 = vcombine.high %v413, %v421
    %v439 = vunpack.c.l.s4 1983009808
    %v440 = vunpack.c.0.s8 %v439
    %v441 = vlaneseq
    %v442 = vshrl.u32 %v441, 7
    %v443 = vsub.s32 %v440, %v442
    %v444 = vrot.slane %v436, %v443
    %v446 = vunpack.c.l.s4 1983009808
    %v447 = vunpack.c.0.s8 %v446
    %v448 = vlaneseq
    %v449 = vshrl.u32 %v448, 7
    %v450 = vsub.s32 %v447, %v449
    %v451 = vrot.slane %v437, %v450
    %v452 = vcombine.low %v417, %v425
    %v453 = vcombine.high %v417, %v425
    %v455 = vunpack.c.l.s4 1983009808
    %v456 = vunpack.c.0.s8 %v455
    %v457 = vlaneseq
    %v458 = vshrl.u32 %v457, 7
    %v459 = vsub.s32 %v456, %v458
    %v460 = vrot.slane %v452, %v459
    %v462 = vunpack.c.l.s4 1983009808
    %v463 = vunpack.c.0.s8 %v462
    %v464 = vlaneseq
    %v465 = vshrl.u32 %v464, 7
    %v466 = vsub.s32 %v463, %v465
    %v467 = vrot.slane %v453, %v466
    %v468 = vcombine.low %v444, %v460
    %v469 = vcombine.high %v444, %v460
    %v471 = vunpack.c.l.s4 1934713408
    %v472 = vunpack.c.0.s8 %v471
    %v473 = vlaneseq
    %v474 = vshrl.u32 %v473, 7
    %v475 = vsub.s32 %v472, %v474
    %v476 = vrot.slane %v468, %v475
    %v478 = vunpack.c.l.s4 1934713408
    %v479 = vunpack.c.0.s8 %v478
    %v480 = vlaneseq
    %v481 = vshrl.u32 %v480, 7
    %v482 = vsub.s32 %v479, %v481
    %v483 = vrot.slane %v469, %v482
    %v484 = vcombine.low %v451, %v467
    %v485 = vcombine.high %v451, %v467
    %v487 = vunpack.c.l.s4 1934713408
    %v488 = vunpack.c.0.s8 %v487
    %v489 = vlaneseq
    %v490 = vshrl.u32 %v489, 7
    %v491 = vsub.s32 %v488, %v490
    %v492 = vrot.slane %v484, %v491
    %v494 = vunpack.c.l.s4 1934713408
    %v495 = vunpack.c.0.s8 %v494
    %v496 = vlaneseq
    %v497 = vshrl.u32 %v496, 7
    %v498 = vsub.s32 %v495, %v497
    %v499 = vrot.slane %v485, %v498
    %v500 = vcombine.high %v476, 0.0
    %v501 = vcombine.high %v483, 0.0
    %v502 = vcombine.high %v492, 0.0
    %v503 = vcombine.high %v499, 0.0
    %v504 = vcombine.low %v415, %v423
    %v505 = vcombine.high %v415, %v423
    %v507 = vunpack.c.l.s4 1983009808
    %v508 = vunpack.c.0.s8 %v507
    %v509 = vlaneseq
    %v510 = vshrl.u32 %v509, 7
    %v511 = vsub.s32 %v508, %v510
    %v512 = vrot.slane %v504, %v511
    %v514 = vunpack.c.l.s4 1983009808
    %v515 = vunpack.c.0.s8 %v514
    %v516 = vlaneseq
    %v517 = vshrl.u32 %v516, 7
    %v518 = vsub.s32 %v515, %v517
    %v519 = vrot.slane %v505, %v518
    %v520 = vcombine.low %v419, %v427
    %v521 = vcombine.high %v419, %v427
    %v523 = vunpack.c.l.s4 1983009808
    %v524 = vunpack.c.0.s8 %v523
    %v525 = vlaneseq
    %v526 = vshrl.u32 %v525, 7
    %v527 = vsub.s32 %v524, %v526
    %v528 = vrot.slane %v520, %v527
    %v530 = vunpack.c.l.s4 1983009808
    %v531 = vunpack.c.0.s8 %v530
    %v532 = vlaneseq
    %v533 = vshrl.u32 %v532, 7
    %v534 = vsub.s32 %v531, %v533
    %v535 = vrot.slane %v521, %v534
    %v536 = vcombine.low %v512, %v528
    %v537 = vcombine.high %v512, %v528
    %v539 = vunpack.c.l.s4 1934713408
    %v540 = vunpack.c.0.s8 %v539
    %v541 = vlaneseq
    %v542 = vshrl.u32 %v541, 7
    %v543 = vsub.s32 %v540, %v542
    %v544 = vrot.slane %v536, %v543
    %v546 = vunpack.c.l.s4 1934713408
    %v547 = vunpack.c.0.s8 %v546
    %v548 = vlaneseq
    %v549 = vshrl.u32 %v548, 7
    %v550 = vsub.s32 %v547, %v549
    %v551 = vrot.slane %v537, %v550
    %v552 = vcombine.low %v519, %v535
    %v553 = vcombine.high %v519, %v535
    %v555 = vunpack.c.l.s4 1934713408
    %v556 = vunpack.c.0.s8 %v555
    %v557 = vlaneseq
    %v558 = vshrl.u32 %v557, 7
    %v559 = vsub.s32 %v556, %v558
    %v560 = vrot.slane %v552, %v559
    %v562 = vunpack.c.l.s4 1934713408
    %v563 = vunpack.c.0.s8 %v562
    %v564 = vlaneseq
    %v565 = vshrl.u32 %v564, 7
    %v566 = vsub.s32 %v563, %v565
    %v567 = vrot.slane %v553, %v566
    %v568 = vcombine.high %v544, 0.0
    %v569 = vcombine.high %v551, 0.0
    %v570 = vcombine.high %v560, 0.0
    %v571 = vcombine.high %v567, 0.0
    %v572 = vcombine.low %v476, %v483
    %v574 = vunpack.c.l.s4 1983009808
    %v575 = vunpack.c.0.s8 %v574
    %v576 = vlaneseq
    %v577 = vshrl.u32 %v576, 7
    %v578 = vsub.s32 %v575, %v577
    %v579 = vrot.slane %v572, %v578
    %v580 = vcombine.low %v500, %v501
    %v582 = vunpack.c.l.s4 1983009808
    %v583 = vunpack.c.0.s8 %v582
    %v584 = vlaneseq
    %v585 = vshrl.u32 %v584, 7
    %v586 = vsub.s32 %v583, %v585
    %v587 = vrot.slane %v580, %v586
    %v588 = vcombine.low %v492, %v499
    %v590 = vunpack.c.l.s4 1983009808
    %v591 = vunpack.c.0.s8 %v590
    %v592 = vlaneseq
    %v593 = vshrl.u32 %v592, 7
    %v594 = vsub.s32 %v591, %v593
    %v595 = vrot.slane %v588, %v594
    %v596 = vcombine.low %v502, %v503
    %v598 = vunpack.c.l.s4 1983009808
    %v599 = vunpack.c.0.s8 %v598
    %v600 = vlaneseq
    %v601 = vshrl.u32 %v600, 7
    %v602 = vsub.s32 %v599, %v601
    %v603 = vrot.slane %v596, %v602
    %v604 = vcombine.low %v579, %v587
    %v605 = vcombine.high %v579, %v587
    %v607 = vunpack.c.l.s4 1934713408
    %v608 = vunpack.c.0.s8 %v607
    %v609 = vlaneseq
    %v610 = vshrl.u32 %v609, 7
    %v611 = vsub.s32 %v608, %v610
    %v612 = vrot.slane %v604, %v611
    %v614 = vunpack.c.l.s4 1934713408
    %v615 = vunpack.c.0.s8 %v614
    %v616 = vlaneseq
    %v617 = vshrl.u32 %v616, 7
    %v618 = vsub.s32 %v615, %v617
    %v619 = vrot.slane %v605, %v618
    %v620 = vcombine.low %v595, %v603
    %v621 = vcombine.high %v595, %v603
    %v623 = vunpack.c.l.s4 1934713408
    %v624 = vunpack.c.0.s8 %v623
    %v625 = vlaneseq
    %v626 = vshrl.u32 %v625, 7
    %v627 = vsub.s32 %v624, %v626
    %v628 = vrot.slane %v620, %v627
    %v630 = vunpack.c.l.s4 1934713408
    %v631 = vunpack.c.0.s8 %v630
    %v632 = vlaneseq
    %v633 = vshrl.u32 %v632, 7
    %v634 = vsub.s32 %v631, %v633
    %v635 = vrot.slane %v621, %v634
    %v636 = vcombine.low %v612, %v628
    %v637 = vcombine.high %v612, %v628
    %v638 = vcombine.low %v619, %v635
    %v639 = vcombine.high %v619, %v635
    %v640 = vcombine.low %v544, %v551
    %v642 = vunpack.c.l.s4 1983009808
    %v643 = vunpack.c.0.s8 %v642
    %v644 = vlaneseq
    %v645 = vshrl.u32 %v644, 7
    %v646 = vsub.s32 %v643, %v645
    %v647 = vrot.slane %v640, %v646
    %v648 = vcombine.low %v568, %v569
    %v650 = vunpack.c.l.s4 1983009808
    %v651 = vunpack.c.0.s8 %v650
    %v652 = vlaneseq
    %v653 = vshrl.u32 %v652, 7
    %v654 = vsub.s32 %v651, %v653
    %v655 = vrot.slane %v648, %v654
    %v656 = vcombine.low %v560, %v567
    %v658 = vunpack.c.l.s4 1983009808
    %v659 = vunpack.c.0.s8 %v658
    %v660 = vlaneseq
    %v661 = vshrl.u32 %v660, 7
    %v662 = vsub.s32 %v659, %v661
    %v663 = vrot.slane %v656, %v662
    %v664 = vcombine.low %v570, %v571
    %v666 = vunpack.c.l.s4 1983009808
    %v667 = vunpack.c.0.s8 %v666
    %v668 = vlaneseq
    %v669 = vshrl.u32 %v668, 7
    %v670 = vsub.s32 %v667, %v669
    %v671 = vrot.slane %v664, %v670
    %v672 = vcombine.low %v647, %v655
    %v673 = vcombine.high %v647, %v655
    %v675 = vunpack.c.l.s4 1934713408
    %v676 = vunpack.c.0.s8 %v675
    %v677 = vlaneseq
    %v678 = vshrl.u32 %v677, 7
    %v679 = vsub.s32 %v676, %v678
    %v680 = vrot.slane %v672, %v679
    %v682 = vunpack.c.l.s4 1934713408
    %v683 = vunpack.c.0.s8 %v682
    %v684 = vlaneseq
    %v685 = vshrl.u32 %v684, 7
    %v686 = vsub.s32 %v683, %v685
    %v687 = vrot.slane %v673, %v686
    %v688 = vcombine.low %v663, %v671
    %v689 = vcombine.high %v663, %v671
    %v691 = vunpack.c.l.s4 1934713408
    %v692 = vunpack.c.0.s8 %v691
    %v693 = vlaneseq
    %v694 = vshrl.u32 %v693, 7
    %v695 = vsub.s32 %v692, %v694
    %v696 = vrot.slane %v688, %v695
    %v698 = vunpack.c.l.s4 1934713408
    %v699 = vunpack.c.0.s8 %v698
    %v700 = vlaneseq
    %v701 = vshrl.u32 %v700, 7
    %v702 = vsub.s32 %v699, %v701
    %v703 = vrot.slane %v689, %v702
    %v704 = vcombine.low %v680, %v696
    %v705 = vcombine.high %v680, %v696
    %v706 = vcombine.low %v687, %v703
    %v707 = vcombine.high %v687, %v703
    %708 = vrot.lane.b32.xlu0 %v114, 64
    %v709 = vpop.permute.xlu0 %708
    %710 = vrot.lane.b32.xlu0 %v117, 64
    %v711 = vpop.permute.xlu0 %710
    %712 = vrot.lane.b32.xlu0 %v123, 64
    %v713 = vpop.permute.xlu0 %712
    %714 = vrot.lane.b32.xlu0 %v125, 64
    %v715 = vpop.permute.xlu0 %714
    %716 = vrot.lane.b32.xlu0 %v129, 64
    %v717 = vpop.permute.xlu0 %716
    %718 = vrot.lane.b32.xlu0 %v131, 64
    %v719 = vpop.permute.xlu0 %718
    %720 = vrot.lane.b32.xlu0 %v135, 64
    %v721 = vpop.permute.xlu0 %720
    %722 = vrot.lane.b32.xlu0 %v137, 64
    %v723 = vpop.permute.xlu0 %722
    %v732 = vcombine.low %v709, %v717
    %v733 = vcombine.high %v709, %v717
    %v735 = vunpack.c.l.s4 1983009808
    %v736 = vunpack.c.0.s8 %v735
    %v737 = vlaneseq
    %v738 = vshrl.u32 %v737, 7
    %v739 = vsub.s32 %v736, %v738
    %v740 = vrot.slane %v732, %v739
    %v742 = vunpack.c.l.s4 1983009808
    %v743 = vunpack.c.0.s8 %v742
    %v744 = vlaneseq
    %v745 = vshrl.u32 %v744, 7
    %v746 = vsub.s32 %v743, %v745
    %v747 = vrot.slane %v733, %v746
    %v748 = vcombine.low %v713, %v721
    %v749 = vcombine.high %v713, %v721
    %v751 = vunpack.c.l.s4 1983009808
    %v752 = vunpack.c.0.s8 %v751
    %v753 = vlaneseq
    %v754 = vshrl.u32 %v753, 7
    %v755 = vsub.s32 %v752, %v754
    %v756 = vrot.slane %v748, %v755
    %v758 = vunpack.c.l.s4 1983009808
    %v759 = vunpack.c.0.s8 %v758
    %v760 = vlaneseq
    %v761 = vshrl.u32 %v760, 7
    %v762 = vsub.s32 %v759, %v761
    %v763 = vrot.slane %v749, %v762
    %v764 = vcombine.low %v740, %v756
    %v765 = vcombine.high %v740, %v756
    %v767 = vunpack.c.l.s4 1934713408
    %v768 = vunpack.c.0.s8 %v767
    %v769 = vlaneseq
    %v770 = vshrl.u32 %v769, 7
    %v771 = vsub.s32 %v768, %v770
    %v772 = vrot.slane %v764, %v771
    %v774 = vunpack.c.l.s4 1934713408
    %v775 = vunpack.c.0.s8 %v774
    %v776 = vlaneseq
    %v777 = vshrl.u32 %v776, 7
    %v778 = vsub.s32 %v775, %v777
    %v779 = vrot.slane %v765, %v778
    %v780 = vcombine.low %v747, %v763
    %v781 = vcombine.high %v747, %v763
    %v783 = vunpack.c.l.s4 1934713408
    %v784 = vunpack.c.0.s8 %v783
    %v785 = vlaneseq
    %v786 = vshrl.u32 %v785, 7
    %v787 = vsub.s32 %v784, %v786
    %v788 = vrot.slane %v780, %v787
    %v790 = vunpack.c.l.s4 1934713408
    %v791 = vunpack.c.0.s8 %v790
    %v792 = vlaneseq
    %v793 = vshrl.u32 %v792, 7
    %v794 = vsub.s32 %v791, %v793
    %v795 = vrot.slane %v781, %v794
    %v796 = vcombine.high %v772, 0.0
    %v797 = vcombine.high %v779, 0.0
    %v798 = vcombine.high %v788, 0.0
    %v799 = vcombine.high %v795, 0.0
    %v800 = vcombine.low %v711, %v719
    %v801 = vcombine.high %v711, %v719
    %v803 = vunpack.c.l.s4 1983009808
    %v804 = vunpack.c.0.s8 %v803
    %v805 = vlaneseq
    %v806 = vshrl.u32 %v805, 7
    %v807 = vsub.s32 %v804, %v806
    %v808 = vrot.slane %v800, %v807
    %v810 = vunpack.c.l.s4 1983009808
    %v811 = vunpack.c.0.s8 %v810
    %v812 = vlaneseq
    %v813 = vshrl.u32 %v812, 7
    %v814 = vsub.s32 %v811, %v813
    %v815 = vrot.slane %v801, %v814
    %v816 = vcombine.low %v715, %v723
    %v817 = vcombine.high %v715, %v723
    %v819 = vunpack.c.l.s4 1983009808
    %v820 = vunpack.c.0.s8 %v819
    %v821 = vlaneseq
    %v822 = vshrl.u32 %v821, 7
    %v823 = vsub.s32 %v820, %v822
    %v824 = vrot.slane %v816, %v823
    %v826 = vunpack.c.l.s4 1983009808
    %v827 = vunpack.c.0.s8 %v826
    %v828 = vlaneseq
    %v829 = vshrl.u32 %v828, 7
    %v830 = vsub.s32 %v827, %v829
    %v831 = vrot.slane %v817, %v830
    %v832 = vcombine.low %v808, %v824
    %v833 = vcombine.high %v808, %v824
    %v835 = vunpack.c.l.s4 1934713408
    %v836 = vunpack.c.0.s8 %v835
    %v837 = vlaneseq
    %v838 = vshrl.u32 %v837, 7
    %v839 = vsub.s32 %v836, %v838
    %v840 = vrot.slane %v832, %v839
    %v842 = vunpack.c.l.s4 1934713408
    %v843 = vunpack.c.0.s8 %v842
    %v844 = vlaneseq
    %v845 = vshrl.u32 %v844, 7
    %v846 = vsub.s32 %v843, %v845
    %v847 = vrot.slane %v833, %v846
    %v848 = vcombine.low %v815, %v831
    %v849 = vcombine.high %v815, %v831
    %v851 = vunpack.c.l.s4 1934713408
    %v852 = vunpack.c.0.s8 %v851
    %v853 = vlaneseq
    %v854 = vshrl.u32 %v853, 7
    %v855 = vsub.s32 %v852, %v854
    %v856 = vrot.slane %v848, %v855
    %v858 = vunpack.c.l.s4 1934713408
    %v859 = vunpack.c.0.s8 %v858
    %v860 = vlaneseq
    %v861 = vshrl.u32 %v860, 7
    %v862 = vsub.s32 %v859, %v861
    %v863 = vrot.slane %v849, %v862
    %v864 = vcombine.high %v840, 0.0
    %v865 = vcombine.high %v847, 0.0
    %v866 = vcombine.high %v856, 0.0
    %v867 = vcombine.high %v863, 0.0
    %v868 = vcombine.low %v772, %v779
    %v870 = vunpack.c.l.s4 1983009808
    %v871 = vunpack.c.0.s8 %v870
    %v872 = vlaneseq
    %v873 = vshrl.u32 %v872, 7
    %v874 = vsub.s32 %v871, %v873
    %v875 = vrot.slane %v868, %v874
    %v876 = vcombine.low %v796, %v797
    %v878 = vunpack.c.l.s4 1983009808
    %v879 = vunpack.c.0.s8 %v878
    %v880 = vlaneseq
    %v881 = vshrl.u32 %v880, 7
    %v882 = vsub.s32 %v879, %v881
    %v883 = vrot.slane %v876, %v882
    %v884 = vcombine.low %v788, %v795
    %v886 = vunpack.c.l.s4 1983009808
    %v887 = vunpack.c.0.s8 %v886
    %v888 = vlaneseq
    %v889 = vshrl.u32 %v888, 7
    %v890 = vsub.s32 %v887, %v889
    %v891 = vrot.slane %v884, %v890
    %v892 = vcombine.low %v798, %v799
    %v894 = vunpack.c.l.s4 1983009808
    %v895 = vunpack.c.0.s8 %v894
    %v896 = vlaneseq
    %v897 = vshrl.u32 %v896, 7
    %v898 = vsub.s32 %v895, %v897
    %v899 = vrot.slane %v892, %v898
    %v900 = vcombine.low %v875, %v883
    %v901 = vcombine.high %v875, %v883
    %v903 = vunpack.c.l.s4 1934713408
    %v904 = vunpack.c.0.s8 %v903
    %v905 = vlaneseq
    %v906 = vshrl.u32 %v905, 7
    %v907 = vsub.s32 %v904, %v906
    %v908 = vrot.slane %v900, %v907
    %v910 = vunpack.c.l.s4 1934713408
    %v911 = vunpack.c.0.s8 %v910
    %v912 = vlaneseq
    %v913 = vshrl.u32 %v912, 7
    %v914 = vsub.s32 %v911, %v913
    %v915 = vrot.slane %v901, %v914
    %v916 = vcombine.low %v891, %v899
    %v917 = vcombine.high %v891, %v899
    %v919 = vunpack.c.l.s4 1934713408
    %v920 = vunpack.c.0.s8 %v919
    %v921 = vlaneseq
    %v922 = vshrl.u32 %v921, 7
    %v923 = vsub.s32 %v920, %v922
    %v924 = vrot.slane %v916, %v923
    %v926 = vunpack.c.l.s4 1934713408
    %v927 = vunpack.c.0.s8 %v926
    %v928 = vlaneseq
    %v929 = vshrl.u32 %v928, 7
    %v930 = vsub.s32 %v927, %v929
    %v931 = vrot.slane %v917, %v930
    %v932 = vcombine.low %v908, %v924
    %v933 = vcombine.high %v908, %v924
    %v934 = vcombine.low %v915, %v931
    %v935 = vcombine.high %v915, %v931
    %v936 = vcombine.low %v840, %v847
    %v938 = vunpack.c.l.s4 1983009808
    %v939 = vunpack.c.0.s8 %v938
    %v940 = vlaneseq
    %v941 = vshrl.u32 %v940, 7
    %v942 = vsub.s32 %v939, %v941
    %v943 = vrot.slane %v936, %v942
    %v944 = vcombine.low %v864, %v865
    %v946 = vunpack.c.l.s4 1983009808
    %v947 = vunpack.c.0.s8 %v946
    %v948 = vlaneseq
    %v949 = vshrl.u32 %v948, 7
    %v950 = vsub.s32 %v947, %v949
    %v951 = vrot.slane %v944, %v950
    %v952 = vcombine.low %v856, %v863
    %v954 = vunpack.c.l.s4 1983009808
    %v955 = vunpack.c.0.s8 %v954
    %v956 = vlaneseq
    %v957 = vshrl.u32 %v956, 7
    %v958 = vsub.s32 %v955, %v957
    %v959 = vrot.slane %v952, %v958
    %v960 = vcombine.low %v866, %v867
    %v962 = vunpack.c.l.s4 1983009808
    %v963 = vunpack.c.0.s8 %v962
    %v964 = vlaneseq
    %v965 = vshrl.u32 %v964, 7
    %v966 = vsub.s32 %v963, %v965
    %v967 = vrot.slane %v960, %v966
    %v968 = vcombine.low %v943, %v951
    %v969 = vcombine.high %v943, %v951
    %v971 = vunpack.c.l.s4 1934713408
    %v972 = vunpack.c.0.s8 %v971
    %v973 = vlaneseq
    %v974 = vshrl.u32 %v973, 7
    %v975 = vsub.s32 %v972, %v974
    %v976 = vrot.slane %v968, %v975
    %v978 = vunpack.c.l.s4 1934713408
    %v979 = vunpack.c.0.s8 %v978
    %v980 = vlaneseq
    %v981 = vshrl.u32 %v980, 7
    %v982 = vsub.s32 %v979, %v981
    %v983 = vrot.slane %v969, %v982
    %v984 = vcombine.low %v959, %v967
    %v985 = vcombine.high %v959, %v967
    %v987 = vunpack.c.l.s4 1934713408
    %v988 = vunpack.c.0.s8 %v987
    %v989 = vlaneseq
    %v990 = vshrl.u32 %v989, 7
    %v991 = vsub.s32 %v988, %v990
    %v992 = vrot.slane %v984, %v991
    %v994 = vunpack.c.l.s4 1934713408
    %v995 = vunpack.c.0.s8 %v994
    %v996 = vlaneseq
    %v997 = vshrl.u32 %v996, 7
    %v998 = vsub.s32 %v995, %v997
    %v999 = vrot.slane %v985, %v998
    %v1000 = vcombine.low %v976, %v992
    %v1001 = vcombine.high %v976, %v992
    %v1002 = vcombine.low %v983, %v999
    %v1003 = vcombine.high %v983, %v999
    %v1004 = vld [vmem:[%s1] sm:$0xff]
    %v1005 = vld [vmem:[%s1 + $0x8] sm:$0xff]
    %vm1006 = vcmask 64512
    %v1008 = vsel %vm1006, %v340, 0
    %v1011 = vsel %vm1006, %v408, 0
    %v1014 = vsel %vm1006, %v636, 0
    %v1017 = vsel %vm1006, %v704, 0
    %1019 = vmatprep.subr.mxu0 0.0
    %1020 = vmatpush1.xpose.msra.mxu0 %v1014
    %1021 = vmatprep.subr.mxu0 0.0
    %1022 = vmatpush1.xpose.msra.mxu0 %v1017
    %1023 = vmatprep.subr.mxu0 0.0
    %1024 = vmatpush1.xpose.msra.mxu0 0.0
    %1025 = vmatprep.subr.mxu0 0.0
    %1026 = vmatpush1.xpose.msra.mxu0 0.0
    %1027 = vmatprep.subr.mxu0 0.0
    %1028 = vmatpush1.xpose.msra.mxu0 0.0
    %1029 = vmatprep.subr.mxu0 0.0
    %1030 = vmatpush1.xpose.msra.mxu0 0.0
    %1031 = vmatprep.subr.mxu0 0.0
    %1032 = vmatpush1.xpose.msra.mxu0 0.0
    %1033 = vmatprep.subr.mxu0 0.0
    %1034 = vmatpush1.xpose.msra.mxu0 0.0
    %1035 = vmatprep.subr.mxu0 0.0
    %1036 = vmatpush1.xpose.msra.mxu0 0.0
    %1037 = vmatprep.subr.mxu0 0.0
    %1038 = vmatpush1.xpose.msra.mxu0 0.0
    %1039 = vmatprep.subr.mxu0 0.0
    %1040 = vmatpush1.xpose.msra.mxu0 0.0
    %1041 = vmatprep.subr.mxu0 0.0
    %1042 = vmatpush1.xpose.msra.mxu0 0.0
    %1043 = vmatprep.subr.mxu0 0.0
    %1044 = vmatpush1.xpose.msra.mxu0 0.0
    %1045 = vmatprep.subr.mxu0 0.0
    %1046 = vmatpush1.xpose.msra.mxu0 0.0
    %1047 = vmatprep.subr.mxu0 0.0
    %1048 = vmatpush1.xpose.msra.mxu0 0.0
    %1049 = vmatprep.subr.mxu0 0.0
    %1050 = vmatpush1.xpose.msra.mxu0 0.0
    %1051 = vmatprep.subr.mxu0 0.0
    %1052 = vmatpush1.xpose.msra.mxu0 0.0
    %1053 = vmatprep.subr.mxu0 0.0
    %1054 = vmatpush1.xpose.msra.mxu0 0.0
    %1055 = vmatprep.subr.mxu0 0.0
    %1056 = vmatpush1.xpose.msra.mxu0 0.0
    %1057 = vmatprep.subr.mxu0 0.0
    %1058 = vmatpush1.xpose.msra.mxu0 0.0
    %1059 = vmatprep.subr.mxu0 0.0
    %1060 = vmatpush1.xpose.msra.mxu0 0.0
    %1061 = vmatprep.subr.mxu0 0.0
    %1062 = vmatpush1.xpose.msra.mxu0 0.0
    %1063 = vmatprep.subr.mxu0 0.0
    %1064 = vmatpush1.xpose.msra.mxu0 0.0
    %1065 = vmatprep.subr.mxu0 0.0
    %1066 = vmatpush1.xpose.msra.mxu0 0.0
    %1067 = vmatprep.subr.mxu0 0.0
    %1068 = vmatpush1.xpose.msra.mxu0 0.0
    %1069 = vmatprep.subr.mxu0 0.0
    %1070 = vmatpush1.xpose.msra.mxu0 0.0
    %1071 = vmatprep.subr.mxu0 0.0
    %1072 = vmatpush1.xpose.msra.mxu0 0.0
    %1073 = vmatprep.subr.mxu0 0.0
    %1074 = vmatpush1.xpose.msra.mxu0 0.0
    %1075 = vmatprep.subr.mxu0 0.0
    %1076 = vmatpush1.xpose.msra.mxu0 0.0
    %1077 = vmatprep.subr.mxu0 0.0
    %1078 = vmatpush1.xpose.msra.mxu0 0.0
    %1079 = vmatprep.subr.mxu0 0.0
    %1080 = vmatpush1.xpose.msra.mxu0 0.0
    %1081 = vmatprep.subr.mxu0 0.0
    %1082 = vmatpush1.xpose.msra.mxu0 0.0
    %1083 = vmatprep.mubr.f32.mxu0 0.0
    %1084 = vmatmul.mubr.f32.gmra.mrb[0].mxu0 %v1008
    %v1085 = vpop.f32.mrb[0].mxu0
    %v1086 = vadd.f32 %v1004, %v1085
    %v1087 = vpop.f32.mrb[0].mxu0
    %1088 = vmatprep.mubr.f32.mxu0 0.0
    %1089 = vmatmul.mubr.f32.gmra.mrb[0].mxu0 %v1011
    %v1090 = vpop.f32.mrb[0].mxu0
    %v1091 = vadd.f32 %v1005, %v1090
    %v1092 = vpop.f32.mrb[0].mxu0
    %1093 = vdwg.mxu0
    %v1095 = vsel %vm1006, %v341, 0
    %v1098 = vsel %vm1006, %v409, 0
    %v1101 = vsel %vm1006, %v637, 0
    %v1104 = vsel %vm1006, %v705, 0
    %1106 = vmatprep.subr.mxu0 0.0
    %1107 = vmatpush1.xpose.msra.mxu0 %v1101
    %1108 = vmatprep.subr.mxu0 0.0
    %1109 = vmatpush1.xpose.msra.mxu0 %v1104
    %1110 = vmatprep.subr.mxu0 0.0
    %1111 = vmatpush1.xpose.msra.mxu0 0.0
    %1112 = vmatprep.subr.mxu0 0.0
    %1113 = vmatpush1.xpose.msra.mxu0 0.0
    %1114 = vmatprep.subr.mxu0 0.0
    %1115 = vmatpush1.xpose.msra.mxu0 0.0
    %1116 = vmatprep.subr.mxu0 0.0
    %1117 = vmatpush1.xpose.msra.mxu0 0.0
    %1118 = vmatprep.subr.mxu0 0.0
    %1119 = vmatpush1.xpose.msra.mxu0 0.0
    %1120 = vmatprep.subr.mxu0 0.0
    %1121 = vmatpush1.xpose.msra.mxu0 0.0
    %1122 = vmatprep.subr.mxu0 0.0
    %1123 = vmatpush1.xpose.msra.mxu0 0.0
    %1124 = vmatprep.subr.mxu0 0.0
    %1125 = vmatpush1.xpose.msra.mxu0 0.0
    %1126 = vmatprep.subr.mxu0 0.0
    %1127 = vmatpush1.xpose.msra.mxu0 0.0
    %1128 = vmatprep.subr.mxu0 0.0
    %1129 = vmatpush1.xpose.msra.mxu0 0.0
    %1130 = vmatprep.subr.mxu0 0.0
    %1131 = vmatpush1.xpose.msra.mxu0 0.0
    %1132 = vmatprep.subr.mxu0 0.0
    %1133 = vmatpush1.xpose.msra.mxu0 0.0
    %1134 = vmatprep.subr.mxu0 0.0
    %1135 = vmatpush1.xpose.msra.mxu0 0.0
    %1136 = vmatprep.subr.mxu0 0.0
    %1137 = vmatpush1.xpose.msra.mxu0 0.0
    %1138 = vmatprep.subr.mxu0 0.0
    %1139 = vmatpush1.xpose.msra.mxu0 0.0
    %1140 = vmatprep.subr.mxu0 0.0
    %1141 = vmatpush1.xpose.msra.mxu0 0.0
    %1142 = vmatprep.subr.mxu0 0.0
    %1143 = vmatpush1.xpose.msra.mxu0 0.0
    %1144 = vmatprep.subr.mxu0 0.0
    %1145 = vmatpush1.xpose.msra.mxu0 0.0
    %1146 = vmatprep.subr.mxu0 0.0
    %1147 = vmatpush1.xpose.msra.mxu0 0.0
    %1148 = vmatprep.subr.mxu0 0.0
    %1149 = vmatpush1.xpose.msra.mxu0 0.0
    %1150 = vmatprep.subr.mxu0 0.0
    %1151 = vmatpush1.xpose.msra.mxu0 0.0
    %1152 = vmatprep.subr.mxu0 0.0
    %1153 = vmatpush1.xpose.msra.mxu0 0.0
    %1154 = vmatprep.subr.mxu0 0.0
    %1155 = vmatpush1.xpose.msra.mxu0 0.0
    %1156 = vmatprep.subr.mxu0 0.0
    %1157 = vmatpush1.xpose.msra.mxu0 0.0
    %1158 = vmatprep.subr.mxu0 0.0
    %1159 = vmatpush1.xpose.msra.mxu0 0.0
    %1160 = vmatprep.subr.mxu0 0.0
    %1161 = vmatpush1.xpose.msra.mxu0 0.0
    %1162 = vmatprep.subr.mxu0 0.0
    %1163 = vmatpush1.xpose.msra.mxu0 0.0
    %1164 = vmatprep.subr.mxu0 0.0
    %1165 = vmatpush1.xpose.msra.mxu0 0.0
    %1166 = vmatprep.subr.mxu0 0.0
    %1167 = vmatpush1.xpose.msra.mxu0 0.0
    %1168 = vmatprep.subr.mxu0 0.0
    %1169 = vmatpush1.xpose.msra.mxu0 0.0
    %1170 = vmatprep.mubr.f32.mxu0 0.0
    %1171 = vmatmul.mubr.f32.gmra.mrb[0].mxu0 %v1095
    %v1172 = vpop.f32.mrb[0].mxu0
    %v1173 = vadd.f32 %v1004, %v1172
    %v1174 = vpop.f32.mrb[0].mxu0
    %1175 = vmatprep.mubr.f32.mxu0 0.0
    %1176 = vmatmul.mubr.f32.gmra.mrb[0].mxu0 %v1098
    %v1177 = vpop.f32.mrb[0].mxu0
    %v1178 = vadd.f32 %v1005, %v1177
    %v1179 = vpop.f32.mrb[0].mxu0
    %1180 = vdwg.mxu0
    %v1182 = vsel %vm1006, %v342, 0
    %v1185 = vsel %vm1006, %v410, 0
    %v1188 = vsel %vm1006, %v638, 0
    %v1191 = vsel %vm1006, %v706, 0
    %1193 = vmatprep.subr.mxu0 0.0
    %1194 = vmatpush1.xpose.msra.mxu0 %v1188
    %1195 = vmatprep.subr.mxu0 0.0
    %1196 = vmatpush1.xpose.msra.mxu0 %v1191
    %1197 = vmatprep.subr.mxu0 0.0
    %1198 = vmatpush1.xpose.msra.mxu0 0.0
    %1199 = vmatprep.subr.mxu0 0.0
    %1200 = vmatpush1.xpose.msra.mxu0 0.0
    %1201 = vmatprep.subr.mxu0 0.0
    %1202 = vmatpush1.xpose.msra.mxu0 0.0
    %1203 = vmatprep.subr.mxu0 0.0
    %1204 = vmatpush1.xpose.msra.mxu0 0.0
    %1205 = vmatprep.subr.mxu0 0.0
    %1206 = vmatpush1.xpose.msra.mxu0 0.0
    %1207 = vmatprep.subr.mxu0 0.0
    %1208 = vmatpush1.xpose.msra.mxu0 0.0
    %1209 = vmatprep.subr.mxu0 0.0
    %1210 = vmatpush1.xpose.msra.mxu0 0.0
    %1211 = vmatprep.subr.mxu0 0.0
    %1212 = vmatpush1.xpose.msra.mxu0 0.0
    %1213 = vmatprep.subr.mxu0 0.0
    %1214 = vmatpush1.xpose.msra.mxu0 0.0
    %1215 = vmatprep.subr.mxu0 0.0
    %1216 = vmatpush1.xpose.msra.mxu0 0.0
    %1217 = vmatprep.subr.mxu0 0.0
    %1218 = vmatpush1.xpose.msra.mxu0 0.0
    %1219 = vmatprep.subr.mxu0 0.0
    %1220 = vmatpush1.xpose.msra.mxu0 0.0
    %1221 = vmatprep.subr.mxu0 0.0
    %1222 = vmatpush1.xpose.msra.mxu0 0.0
    %1223 = vmatprep.subr.mxu0 0.0
    %1224 = vmatpush1.xpose.msra.mxu0 0.0
    %1225 = vmatprep.subr.mxu0 0.0
    %1226 = vmatpush1.xpose.msra.mxu0 0.0
    %1227 = vmatprep.subr.mxu0 0.0
    %1228 = vmatpush1.xpose.msra.mxu0 0.0
    %1229 = vmatprep.subr.mxu0 0.0
    %1230 = vmatpush1.xpose.msra.mxu0 0.0
    %1231 = vmatprep.subr.mxu0 0.0
    %1232 = vmatpush1.xpose.msra.mxu0 0.0
    %1233 = vmatprep.subr.mxu0 0.0
    %1234 = vmatpush1.xpose.msra.mxu0 0.0
    %1235 = vmatprep.subr.mxu0 0.0
    %1236 = vmatpush1.xpose.msra.mxu0 0.0
    %1237 = vmatprep.subr.mxu0 0.0
    %1238 = vmatpush1.xpose.msra.mxu0 0.0
    %1239 = vmatprep.subr.mxu0 0.0
    %1240 = vmatpush1.xpose.msra.mxu0 0.0
    %1241 = vmatprep.subr.mxu0 0.0
    %1242 = vmatpush1.xpose.msra.mxu0 0.0
    %1243 = vmatprep.subr.mxu0 0.0
    %1244 = vmatpush1.xpose.msra.mxu0 0.0
    %1245 = vmatprep.subr.mxu0 0.0
    %1246 = vmatpush1.xpose.msra.mxu0 0.0
    %1247 = vmatprep.subr.mxu0 0.0
    %1248 = vmatpush1.xpose.msra.mxu0 0.0
    %1249 = vmatprep.subr.mxu0 0.0
    %1250 = vmatpush1.xpose.msra.mxu0 0.0
    %1251 = vmatprep.subr.mxu0 0.0
    %1252 = vmatpush1.xpose.msra.mxu0 0.0
    %1253 = vmatprep.subr.mxu0 0.0
    %1254 = vmatpush1.xpose.msra.mxu0 0.0
    %1255 = vmatprep.subr.mxu0 0.0
    %1256 = vmatpush1.xpose.msra.mxu0 0.0
    %1257 = vmatprep.mubr.f32.mxu0 0.0
    %1258 = vmatmul.mubr.f32.gmra.mrb[0].mxu0 %v1182
    %v1259 = vpop.f32.mrb[0].mxu0
    %v1260 = vadd.f32 %v1004, %v1259
    %v1261 = vpop.f32.mrb[0].mxu0
    %1262 = vmatprep.mubr.f32.mxu0 0.0
    %1263 = vmatmul.mubr.f32.gmra.mrb[0].mxu0 %v1185
    %v1264 = vpop.f32.mrb[0].mxu0
    %v1265 = vadd.f32 %v1005, %v1264
    %v1266 = vpop.f32.mrb[0].mxu0
    %1267 = vdwg.mxu0
    %v1269 = vsel %vm1006, %v343, 0
    %v1272 = vsel %vm1006, %v411, 0
    %v1275 = vsel %vm1006, %v639, 0
    %v1278 = vsel %vm1006, %v707, 0
    %1280 = vmatprep.subr.mxu0 0.0
    %1281 = vmatpush1.xpose.msra.mxu0 %v1275
    %1282 = vmatprep.subr.mxu0 0.0
    %1283 = vmatpush1.xpose.msra.mxu0 %v1278
    %1284 = vmatprep.subr.mxu0 0.0
    %1285 = vmatpush1.xpose.msra.mxu0 0.0
    %1286 = vmatprep.subr.mxu0 0.0
    %1287 = vmatpush1.xpose.msra.mxu0 0.0
    %1288 = vmatprep.subr.mxu0 0.0
    %1289 = vmatpush1.xpose.msra.mxu0 0.0
    %1290 = vmatprep.subr.mxu0 0.0
    %1291 = vmatpush1.xpose.msra.mxu0 0.0
    %1292 = vmatprep.subr.mxu0 0.0
    %1293 = vmatpush1.xpose.msra.mxu0 0.0
    %1294 = vmatprep.subr.mxu0 0.0
    %1295 = vmatpush1.xpose.msra.mxu0 0.0
    %1296 = vmatprep.subr.mxu0 0.0
    %1297 = vmatpush1.xpose.msra.mxu0 0.0
    %1298 = vmatprep.subr.mxu0 0.0
    %1299 = vmatpush1.xpose.msra.mxu0 0.0
    %1300 = vmatprep.subr.mxu0 0.0
    %1301 = vmatpush1.xpose.msra.mxu0 0.0
    %1302 = vmatprep.subr.mxu0 0.0
    %1303 = vmatpush1.xpose.msra.mxu0 0.0
    %1304 = vmatprep.subr.mxu0 0.0
    %1305 = vmatpush1.xpose.msra.mxu0 0.0
    %1306 = vmatprep.subr.mxu0 0.0
    %1307 = vmatpush1.xpose.msra.mxu0 0.0
    %1308 = vmatprep.subr.mxu0 0.0
    %1309 = vmatpush1.xpose.msra.mxu0 0.0
    %1310 = vmatprep.subr.mxu0 0.0
    %1311 = vmatpush1.xpose.msra.mxu0 0.0
    %1312 = vmatprep.subr.mxu0 0.0
    %1313 = vmatpush1.xpose.msra.mxu0 0.0
    %1314 = vmatprep.subr.mxu0 0.0
    %1315 = vmatpush1.xpose.msra.mxu0 0.0
    %1316 = vmatprep.subr.mxu0 0.0
    %1317 = vmatpush1.xpose.msra.mxu0 0.0
    %1318 = vmatprep.subr.mxu0 0.0
    %1319 = vmatpush1.xpose.msra.mxu0 0.0
    %1320 = vmatprep.subr.mxu0 0.0
    %1321 = vmatpush1.xpose.msra.mxu0 0.0
    %1322 = vmatprep.subr.mxu0 0.0
    %1323 = vmatpush1.xpose.msra.mxu0 0.0
    %1324 = vmatprep.subr.mxu0 0.0
    %1325 = vmatpush1.xpose.msra.mxu0 0.0
    %1326 = vmatprep.subr.mxu0 0.0
    %1327 = vmatpush1.xpose.msra.mxu0 0.0
    %1328 = vmatprep.subr.mxu0 0.0
    %1329 = vmatpush1.xpose.msra.mxu0 0.0
    %1330 = vmatprep.subr.mxu0 0.0
    %1331 = vmatpush1.xpose.msra.mxu0 0.0
    %1332 = vmatprep.subr.mxu0 0.0
    %1333 = vmatpush1.xpose.msra.mxu0 0.0
    %1334 = vmatprep.subr.mxu0 0.0
    %1335 = vmatpush1.xpose.msra.mxu0 0.0
    %1336 = vmatprep.subr.mxu0 0.0
    %1337 = vmatpush1.xpose.msra.mxu0 0.0
    %1338 = vmatprep.subr.mxu0 0.0
    %1339 = vmatpush1.xpose.msra.mxu0 0.0
    %1340 = vmatprep.subr.mxu0 0.0
    %1341 = vmatpush1.xpose.msra.mxu0 0.0
    %1342 = vmatprep.subr.mxu0 0.0
    %1343 = vmatpush1.xpose.msra.mxu0 0.0
    %1344 = vmatprep.mubr.f32.mxu0 0.0
    %1345 = vmatmul.mubr.f32.gmra.mrb[0].mxu0 %v1269
    %v1346 = vpop.f32.mrb[0].mxu0
    %v1347 = vadd.f32 %v1004, %v1346
    %v1348 = vpop.f32.mrb[0].mxu0
    %1349 = vmatprep.mubr.f32.mxu0 0.0
    %1350 = vmatmul.mubr.f32.gmra.mrb[0].mxu0 %v1272
    %v1351 = vpop.f32.mrb[0].mxu0
    %v1352 = vadd.f32 %v1005, %v1351
    %v1353 = vpop.f32.mrb[0].mxu0
    %1354 = vdwg.mxu0
    %vm1355 = vcmask 130048
    %v1356 = vsel %vm1355, %v1086, -inf
    %1357 = vmax.xlane.f32.xlu0 %v1356
    %v1358 = vpop.xlane.xlu0 %1357
    %v1359 = vsel %vm1355, %v1091, -inf
    %1360 = vmax.xlane.f32.xlu0 %v1359
    %v1361 = vpop.xlane.xlu0 %1360
    %v1362 = vsel %vm1355, %v1173, -inf
    %1363 = vmax.xlane.f32.xlu0 %v1362
    %v1364 = vpop.xlane.xlu0 %1363
    %v1365 = vsel %vm1355, %v1178, -inf
    %1366 = vmax.xlane.f32.xlu0 %v1365
    %v1367 = vpop.xlane.xlu0 %1366
    %v1368 = vsel %vm1355, %v1260, -inf
    %1369 = vmax.xlane.f32.xlu0 %v1368
    %v1370 = vpop.xlane.xlu0 %1369
    %v1371 = vsel %vm1355, %v1265, -inf
    %1372 = vmax.xlane.f32.xlu0 %v1371
    %v1373 = vpop.xlane.xlu0 %1372
    %v1374 = vsel %vm1355, %v1347, -inf
    %1375 = vmax.xlane.f32.xlu0 %v1374
    %v1376 = vpop.xlane.xlu0 %1375
    %v1377 = vsel %vm1355, %v1352, -inf
    %1378 = vmax.xlane.f32.xlu0 %v1377
    %v1379 = vpop.xlane.xlu0 %1378
    %v1380 = vsub.f32 %v1086, %v1358
    %v1381 = vsub.f32 %v1091, %v1361
    %v1382 = vsub.f32 %v1173, %v1364
    %v1383 = vsub.f32 %v1178, %v1367
    %v1384 = vsub.f32 %v1260, %v1370
    %v1385 = vsub.f32 %v1265, %v1373
    %v1386 = vsub.f32 %v1347, %v1376
    %v1387 = vsub.f32 %v1352, %v1379
    %v1388 = vmul.f32 %v1380, 1.442695
    %v1389 = vpow.pop %v1388
    %v1390 = vmul.f32 %v1381, 1.442695
    %v1391 = vpow.pop %v1390
    %v1392 = vmul.f32 %v1382, 1.442695
    %v1393 = vpow.pop %v1392
    %v1394 = vmul.f32 %v1383, 1.442695
    %v1395 = vpow.pop %v1394
    %v1396 = vmul.f32 %v1384, 1.442695
    %v1397 = vpow.pop %v1396
    %v1398 = vmul.f32 %v1385, 1.442695
    %v1399 = vpow.pop %v1398
    %v1400 = vmul.f32 %v1386, 1.442695
    %v1401 = vpow.pop %v1400
    %v1402 = vmul.f32 %v1387, 1.442695
    %v1403 = vpow.pop %v1402
    %v1404 = vsel %vm1355, %v1389, 0.0
    %1405 = vadd.xlane.f32.xlu0 %v1404
    %v1406 = vpop.xlane.xlu0 %1405
    %v1407 = vsel %vm1355, %v1391, 0.0
    %1408 = vadd.xlane.f32.xlu0 %v1407
    %v1409 = vpop.xlane.xlu0 %1408
    %v1410 = vsel %vm1355, %v1393, 0.0
    %1411 = vadd.xlane.f32.xlu0 %v1410
    %v1412 = vpop.xlane.xlu0 %1411
    %v1413 = vsel %vm1355, %v1395, 0.0
    %1414 = vadd.xlane.f32.xlu0 %v1413
    %v1415 = vpop.xlane.xlu0 %1414
    %v1416 = vsel %vm1355, %v1397, 0.0
    %1417 = vadd.xlane.f32.xlu0 %v1416
    %v1418 = vpop.xlane.xlu0 %1417
    %v1419 = vsel %vm1355, %v1399, 0.0
    %1420 = vadd.xlane.f32.xlu0 %v1419
    %v1421 = vpop.xlane.xlu0 %1420
    %v1422 = vsel %vm1355, %v1401, 0.0
    %1423 = vadd.xlane.f32.xlu0 %v1422
    %v1424 = vpop.xlane.xlu0 %1423
    %v1425 = vsel %vm1355, %v1403, 0.0
    %1426 = vadd.xlane.f32.xlu0 %v1425
    %v1427 = vpop.xlane.xlu0 %1426
    %v1428 = vrcp.pop %v1406
    %v1429 = vrcp.pop %v1409
    %v1430 = vrcp.pop %v1412
    %v1431 = vrcp.pop %v1415
    %v1432 = vrcp.pop %v1418
    %v1433 = vrcp.pop %v1421
    %v1434 = vrcp.pop %v1424
    %v1435 = vrcp.pop %v1427
    %v1436 = vmul.f32 %v1389, %v1428
    %v1437 = vmul.f32 %v1391, %v1429
    %v1438 = vmul.f32 %v1393, %v1430
    %v1439 = vmul.f32 %v1395, %v1431
    %v1440 = vmul.f32 %v1397, %v1432
    %v1441 = vmul.f32 %v1399, %v1433
    %v1442 = vmul.f32 %v1401, %v1434
    %v1443 = vmul.f32 %v1403, %v1435
    %v1445 = vsel %vm1355, %v1436, 0
    %v1448 = vsel %vm1355, %v1437, 0
    %1450 = vmatprep.subr.mxu0 0.0
    %1451 = vmatpush1.msra.mxu0 %v932
    %1452 = vmatprep.subr.mxu0 0.0
    %1453 = vmatpush1.msra.mxu0 %v1000
    %1454 = vmatprep.subr.mxu0 0.0
    %1455 = vmatpush1.msra.mxu0 0.0
    %1456 = vmatprep.subr.mxu0 0.0
    %1457 = vmatpush1.msra.mxu0 0.0
    %1458 = vmatprep.subr.mxu0 0.0
    %1459 = vmatpush1.msra.mxu0 0.0
    %1460 = vmatprep.subr.mxu0 0.0
    %1461 = vmatpush1.msra.mxu0 0.0
    %1462 = vmatprep.subr.mxu0 0.0
    %1463 = vmatpush1.msra.mxu0 0.0
    %1464 = vmatprep.subr.mxu0 0.0
    %1465 = vmatpush1.msra.mxu0 0.0
    %1466 = vmatprep.subr.mxu0 0.0
    %1467 = vmatpush1.msra.mxu0 0.0
    %1468 = vmatprep.subr.mxu0 0.0
    %1469 = vmatpush1.msra.mxu0 0.0
    %1470 = vmatprep.subr.mxu0 0.0
    %1471 = vmatpush1.msra.mxu0 0.0
    %1472 = vmatprep.subr.mxu0 0.0
    %1473 = vmatpush1.msra.mxu0 0.0
    %1474 = vmatprep.subr.mxu0 0.0
    %1475 = vmatpush1.msra.mxu0 0.0
    %1476 = vmatprep.subr.mxu0 0.0
    %1477 = vmatpush1.msra.mxu0 0.0
    %1478 = vmatprep.subr.mxu0 0.0
    %1479 = vmatpush1.msra.mxu0 0.0
    %1480 = vmatprep.subr.mxu0 0.0
    %1481 = vmatpush1.msra.mxu0 0.0
    %1482 = vmatprep.subr.mxu0 0.0
    %1483 = vmatpush1.msra.mxu0 0.0
    %1484 = vmatprep.subr.mxu0 0.0
    %1485 = vmatpush1.msra.mxu0 0.0
    %1486 = vmatprep.subr.mxu0 0.0
    %1487 = vmatpush1.msra.mxu0 0.0
    %1488 = vmatprep.subr.mxu0 0.0
    %1489 = vmatpush1.msra.mxu0 0.0
    %1490 = vmatprep.subr.mxu0 0.0
    %1491 = vmatpush1.msra.mxu0 0.0
    %1492 = vmatprep.subr.mxu0 0.0
    %1493 = vmatpush1.msra.mxu0 0.0
    %1494 = vmatprep.subr.mxu0 0.0
    %1495 = vmatpush1.msra.mxu0 0.0
    %1496 = vmatprep.subr.mxu0 0.0
    %1497 = vmatpush1.msra.mxu0 0.0
    %1498 = vmatprep.subr.mxu0 0.0
    %1499 = vmatpush1.msra.mxu0 0.0
    %1500 = vmatprep.subr.mxu0 0.0
    %1501 = vmatpush1.msra.mxu0 0.0
    %1502 = vmatprep.subr.mxu0 0.0
    %1503 = vmatpush1.msra.mxu0 0.0
    %1504 = vmatprep.subr.mxu0 0.0
    %1505 = vmatpush1.msra.mxu0 0.0
    %1506 = vmatprep.subr.mxu0 0.0
    %1507 = vmatpush1.msra.mxu0 0.0
    %1508 = vmatprep.subr.mxu0 0.0
    %1509 = vmatpush1.msra.mxu0 0.0
    %1510 = vmatprep.subr.mxu0 0.0
    %1511 = vmatpush1.msra.mxu0 0.0
    %1512 = vmatprep.subr.mxu0 0.0
    %1513 = vmatpush1.msra.mxu0 0.0
    %1514 = vmatprep.mubr.f32.mxu0 0.0
    %1515 = vmatmul.mubr.f32.gmra.mrb[0].mxu0 %v1445
    %v1516 = vpop.f32.mrb[0].mxu0
    %v1517 = vadd.f32 0.0, %v1516
    %v1518 = vpop.f32.mrb[0].mxu0
    %1519 = vmatprep.mubr.f32.mxu0 0.0
    %1520 = vmatmul.mubr.f32.gmra.mrb[0].mxu0 %v1448
    %v1521 = vpop.f32.mrb[0].mxu0
    %v1522 = vadd.f32 0.0, %v1521
    %v1523 = vpop.f32.mrb[0].mxu0
    %1524 = vdwg.mxu0
    %v1526 = vsel %vm1355, %v1438, 0
    %v1529 = vsel %vm1355, %v1439, 0
    %1531 = vmatprep.subr.mxu0 0.0
    %1532 = vmatpush1.msra.mxu0 %v933
    %1533 = vmatprep.subr.mxu0 0.0
    %1534 = vmatpush1.msra.mxu0 %v1001
    %1535 = vmatprep.subr.mxu0 0.0
    %1536 = vmatpush1.msra.mxu0 0.0
    %1537 = vmatprep.subr.mxu0 0.0
    %1538 = vmatpush1.msra.mxu0 0.0
    %1539 = vmatprep.subr.mxu0 0.0
    %1540 = vmatpush1.msra.mxu0 0.0
    %1541 = vmatprep.subr.mxu0 0.0
    %1542 = vmatpush1.msra.mxu0 0.0
    %1543 = vmatprep.subr.mxu0 0.0
    %1544 = vmatpush1.msra.mxu0 0.0
    %1545 = vmatprep.subr.mxu0 0.0
    %1546 = vmatpush1.msra.mxu0 0.0
    %1547 = vmatprep.subr.mxu0 0.0
    %1548 = vmatpush1.msra.mxu0 0.0
    %1549 = vmatprep.subr.mxu0 0.0
    %1550 = vmatpush1.msra.mxu0 0.0
    %1551 = vmatprep.subr.mxu0 0.0
    %1552 = vmatpush1.msra.mxu0 0.0
    %1553 = vmatprep.subr.mxu0 0.0
    %1554 = vmatpush1.msra.mxu0 0.0
    %1555 = vmatprep.subr.mxu0 0.0
    %1556 = vmatpush1.msra.mxu0 0.0
    %1557 = vmatprep.subr.mxu0 0.0
    %1558 = vmatpush1.msra.mxu0 0.0
    %1559 = vmatprep.subr.mxu0 0.0
    %1560 = vmatpush1.msra.mxu0 0.0
    %1561 = vmatprep.subr.mxu0 0.0
    %1562 = vmatpush1.msra.mxu0 0.0
    %1563 = vmatprep.subr.mxu0 0.0
    %1564 = vmatpush1.msra.mxu0 0.0
    %1565 = vmatprep.subr.mxu0 0.0
    %1566 = vmatpush1.msra.mxu0 0.0
    %1567 = vmatprep.subr.mxu0 0.0
    %1568 = vmatpush1.msra.mxu0 0.0
    %1569 = vmatprep.subr.mxu0 0.0
    %1570 = vmatpush1.msra.mxu0 0.0
    %1571 = vmatprep.subr.mxu0 0.0
    %1572 = vmatpush1.msra.mxu0 0.0
    %1573 = vmatprep.subr.mxu0 0.0
    %1574 = vmatpush1.msra.mxu0 0.0
    %1575 = vmatprep.subr.mxu0 0.0
    %1576 = vmatpush1.msra.mxu0 0.0
    %1577 = vmatprep.subr.mxu0 0.0
    %1578 = vmatpush1.msra.mxu0 0.0
    %1579 = vmatprep.subr.mxu0 0.0
    %1580 = vmatpush1.msra.mxu0 0.0
    %1581 = vmatprep.subr.mxu0 0.0
    %1582 = vmatpush1.msra.mxu0 0.0
    %1583 = vmatprep.subr.mxu0 0.0
    %1584 = vmatpush1.msra.mxu0 0.0
    %1585 = vmatprep.subr.mxu0 0.0
    %1586 = vmatpush1.msra.mxu0 0.0
    %1587 = vmatprep.subr.mxu0 0.0
    %1588 = vmatpush1.msra.mxu0 0.0
    %1589 = vmatprep.subr.mxu0 0.0
    %1590 = vmatpush1.msra.mxu0 0.0
    %1591 = vmatprep.subr.mxu0 0.0
    %1592 = vmatpush1.msra.mxu0 0.0
    %1593 = vmatprep.subr.mxu0 0.0
    %1594 = vmatpush1.msra.mxu0 0.0
    %1595 = vmatprep.mubr.f32.mxu0 0.0
    %1596 = vmatmul.mubr.f32.gmra.mrb[0].mxu0 %v1526
    %v1597 = vpop.f32.mrb[0].mxu0
    %v1598 = vadd.f32 0.0, %v1597
    %v1599 = vpop.f32.mrb[0].mxu0
    %1600 = vmatprep.mubr.f32.mxu0 0.0
    %1601 = vmatmul.mubr.f32.gmra.mrb[0].mxu0 %v1529
    %v1602 = vpop.f32.mrb[0].mxu0
    %v1603 = vadd.f32 0.0, %v1602
    %v1604 = vpop.f32.mrb[0].mxu0
    %1605 = vdwg.mxu0
    %v1607 = vsel %vm1355, %v1440, 0
    %v1610 = vsel %vm1355, %v1441, 0
    %1612 = vmatprep.subr.mxu0 0.0
    %1613 = vmatpush1.msra.mxu0 %v934
    %1614 = vmatprep.subr.mxu0 0.0
    %1615 = vmatpush1.msra.mxu0 %v1002
    %1616 = vmatprep.subr.mxu0 0.0
    %1617 = vmatpush1.msra.mxu0 0.0
    %1618 = vmatprep.subr.mxu0 0.0
    %1619 = vmatpush1.msra.mxu0 0.0
    %1620 = vmatprep.subr.mxu0 0.0
    %1621 = vmatpush1.msra.mxu0 0.0
    %1622 = vmatprep.subr.mxu0 0.0
    %1623 = vmatpush1.msra.mxu0 0.0
    %1624 = vmatprep.subr.mxu0 0.0
    %1625 = vmatpush1.msra.mxu0 0.0
    %1626 = vmatprep.subr.mxu0 0.0
    %1627 = vmatpush1.msra.mxu0 0.0
    %1628 = vmatprep.subr.mxu0 0.0
    %1629 = vmatpush1.msra.mxu0 0.0
    %1630 = vmatprep.subr.mxu0 0.0
    %1631 = vmatpush1.msra.mxu0 0.0
    %1632 = vmatprep.subr.mxu0 0.0
    %1633 = vmatpush1.msra.mxu0 0.0
    %1634 = vmatprep.subr.mxu0 0.0
    %1635 = vmatpush1.msra.mxu0 0.0
    %1636 = vmatprep.subr.mxu0 0.0
    %1637 = vmatpush1.msra.mxu0 0.0
    %1638 = vmatprep.subr.mxu0 0.0
    %1639 = vmatpush1.msra.mxu0 0.0
    %1640 = vmatprep.subr.mxu0 0.0
    %1641 = vmatpush1.msra.mxu0 0.0
    %1642 = vmatprep.subr.mxu0 0.0
    %1643 = vmatpush1.msra.mxu0 0.0
    %1644 = vmatprep.subr.mxu0 0.0
    %1645 = vmatpush1.msra.mxu0 0.0
    %1646 = vmatprep.subr.mxu0 0.0
    %1647 = vmatpush1.msra.mxu0 0.0
    %1648 = vmatprep.subr.mxu0 0.0
    %1649 = vmatpush1.msra.mxu0 0.0
    %1650 = vmatprep.subr.mxu0 0.0
    %1651 = vmatpush1.msra.mxu0 0.0
    %1652 = vmatprep.subr.mxu0 0.0
    %1653 = vmatpush1.msra.mxu0 0.0
    %1654 = vmatprep.subr.mxu0 0.0
    %1655 = vmatpush1.msra.mxu0 0.0
    %1656 = vmatprep.subr.mxu0 0.0
    %1657 = vmatpush1.msra.mxu0 0.0
    %1658 = vmatprep.subr.mxu0 0.0
    %1659 = vmatpush1.msra.mxu0 0.0
    %1660 = vmatprep.subr.mxu0 0.0
    %1661 = vmatpush1.msra.mxu0 0.0
    %1662 = vmatprep.subr.mxu0 0.0
    %1663 = vmatpush1.msra.mxu0 0.0
    %1664 = vmatprep.subr.mxu0 0.0
    %1665 = vmatpush1.msra.mxu0 0.0
    %1666 = vmatprep.subr.mxu0 0.0
    %1667 = vmatpush1.msra.mxu0 0.0
    %1668 = vmatprep.subr.mxu0 0.0
    %1669 = vmatpush1.msra.mxu0 0.0
    %1670 = vmatprep.subr.mxu0 0.0
    %1671 = vmatpush1.msra.mxu0 0.0
    %1672 = vmatprep.subr.mxu0 0.0
    %1673 = vmatpush1.msra.mxu0 0.0
    %1674 = vmatprep.subr.mxu0 0.0
    %1675 = vmatpush1.msra.mxu0 0.0
    %1676 = vmatprep.mubr.f32.mxu0 0.0
    %1677 = vmatmul.mubr.f32.gmra.mrb[0].mxu0 %v1607
    %v1678 = vpop.f32.mrb[0].mxu0
    %v1679 = vadd.f32 0.0, %v1678
    %v1680 = vpop.f32.mrb[0].mxu0
    %1681 = vmatprep.mubr.f32.mxu0 0.0
    %1682 = vmatmul.mubr.f32.gmra.mrb[0].mxu0 %v1610
    %v1683 = vpop.f32.mrb[0].mxu0
    %v1684 = vadd.f32 0.0, %v1683
    %v1685 = vpop.f32.mrb[0].mxu0
    %1686 = vdwg.mxu0
    %v1688 = vsel %vm1355, %v1442, 0
    %v1691 = vsel %vm1355, %v1443, 0
    %1693 = vmatprep.subr.mxu0 0.0
    %1694 = vmatpush1.msra.mxu0 %v935
    %1695 = vmatprep.subr.mxu0 0.0
    %1696 = vmatpush1.msra.mxu0 %v1003
    %1697 = vmatprep.subr.mxu0 0.0
    %1698 = vmatpush1.msra.mxu0 0.0
    %1699 = vmatprep.subr.mxu0 0.0
    %1700 = vmatpush1.msra.mxu0 0.0
    %1701 = vmatprep.subr.mxu0 0.0
    %1702 = vmatpush1.msra.mxu0 0.0
    %1703 = vmatprep.subr.mxu0 0.0
    %1704 = vmatpush1.msra.mxu0 0.0
    %1705 = vmatprep.subr.mxu0 0.0
    %1706 = vmatpush1.msra.mxu0 0.0
    %1707 = vmatprep.subr.mxu0 0.0
    %1708 = vmatpush1.msra.mxu0 0.0
    %1709 = vmatprep.subr.mxu0 0.0
    %1710 = vmatpush1.msra.mxu0 0.0
    %1711 = vmatprep.subr.mxu0 0.0
    %1712 = vmatpush1.msra.mxu0 0.0
    %1713 = vmatprep.subr.mxu0 0.0
    %1714 = vmatpush1.msra.mxu0 0.0
    %1715 = vmatprep.subr.mxu0 0.0
    %1716 = vmatpush1.msra.mxu0 0.0
    %1717 = vmatprep.subr.mxu0 0.0
    %1718 = vmatpush1.msra.mxu0 0.0
    %1719 = vmatprep.subr.mxu0 0.0
    %1720 = vmatpush1.msra.mxu0 0.0
    %1721 = vmatprep.subr.mxu0 0.0
    %1722 = vmatpush1.msra.mxu0 0.0
    %1723 = vmatprep.subr.mxu0 0.0
    %1724 = vmatpush1.msra.mxu0 0.0
    %1725 = vmatprep.subr.mxu0 0.0
    %1726 = vmatpush1.msra.mxu0 0.0
    %1727 = vmatprep.subr.mxu0 0.0
    %1728 = vmatpush1.msra.mxu0 0.0
    %1729 = vmatprep.subr.mxu0 0.0
    %1730 = vmatpush1.msra.mxu0 0.0
    %1731 = vmatprep.subr.mxu0 0.0
    %1732 = vmatpush1.msra.mxu0 0.0
    %1733 = vmatprep.subr.mxu0 0.0
    %1734 = vmatpush1.msra.mxu0 0.0
    %1735 = vmatprep.subr.mxu0 0.0
    %1736 = vmatpush1.msra.mxu0 0.0
    %1737 = vmatprep.subr.mxu0 0.0
    %1738 = vmatpush1.msra.mxu0 0.0
    %1739 = vmatprep.subr.mxu0 0.0
    %1740 = vmatpush1.msra.mxu0 0.0
    %1741 = vmatprep.subr.mxu0 0.0
    %1742 = vmatpush1.msra.mxu0 0.0
    %1743 = vmatprep.subr.mxu0 0.0
    %1744 = vmatpush1.msra.mxu0 0.0
    %1745 = vmatprep.subr.mxu0 0.0
    %1746 = vmatpush1.msra.mxu0 0.0
    %1747 = vmatprep.subr.mxu0 0.0
    %1748 = vmatpush1.msra.mxu0 0.0
    %1749 = vmatprep.subr.mxu0 0.0
    %1750 = vmatpush1.msra.mxu0 0.0
    %1751 = vmatprep.subr.mxu0 0.0
    %1752 = vmatpush1.msra.mxu0 0.0
    %1753 = vmatprep.subr.mxu0 0.0
    %1754 = vmatpush1.msra.mxu0 0.0
    %1755 = vmatprep.subr.mxu0 0.0
    %1756 = vmatpush1.msra.mxu0 0.0
    %1757 = vmatprep.mubr.f32.mxu0 0.0
    %1758 = vmatmul.mubr.f32.gmra.mrb[0].mxu0 %v1688
    %v1759 = vpop.f32.mrb[0].mxu0
    %v1760 = vadd.f32 0.0, %v1759
    %v1761 = vpop.f32.mrb[0].mxu0
    %1762 = vmatprep.mubr.f32.mxu0 0.0
    %1763 = vmatmul.mubr.f32.gmra.mrb[0].mxu0 %v1691
    %v1764 = vpop.f32.mrb[0].mxu0
    %v1765 = vadd.f32 0.0, %v1764
    %v1766 = vpop.f32.mrb[0].mxu0
    %1767 = vdwg.mxu0
    %v1768 = vcombine.low %v1517, %v1679
    %v1769 = vcombine.high %v1517, %v1679
    %v1771 = vunpack.c.l.s4 1983009808
    %v1772 = vunpack.c.0.s8 %v1771
    %v1773 = vlaneseq
    %v1774 = vshrl.u32 %v1773, 7
    %v1775 = vsub.s32 %v1772, %v1774
    %v1776 = vrot.slane %v1768, %v1775
    %v1778 = vunpack.c.l.s4 1983009808
    %v1779 = vunpack.c.0.s8 %v1778
    %v1780 = vlaneseq
    %v1781 = vshrl.u32 %v1780, 7
    %v1782 = vsub.s32 %v1779, %v1781
    %v1783 = vrot.slane %v1769, %v1782
    %v1784 = vcombine.low %v1598, %v1760
    %v1785 = vcombine.high %v1598, %v1760
    %v1787 = vunpack.c.l.s4 1983009808
    %v1788 = vunpack.c.0.s8 %v1787
    %v1789 = vlaneseq
    %v1790 = vshrl.u32 %v1789, 7
    %v1791 = vsub.s32 %v1788, %v1790
    %v1792 = vrot.slane %v1784, %v1791
    %v1794 = vunpack.c.l.s4 1983009808
    %v1795 = vunpack.c.0.s8 %v1794
    %v1796 = vlaneseq
    %v1797 = vshrl.u32 %v1796, 7
    %v1798 = vsub.s32 %v1795, %v1797
    %v1799 = vrot.slane %v1785, %v1798
    %v1800 = vcombine.low %v1776, %v1792
    %v1801 = vcombine.high %v1776, %v1792
    %v1803 = vunpack.c.l.s4 1934713408
    %v1804 = vunpack.c.0.s8 %v1803
    %v1805 = vlaneseq
    %v1806 = vshrl.u32 %v1805, 7
    %v1807 = vsub.s32 %v1804, %v1806
    %v1808 = vrot.slane %v1800, %v1807
    %v1810 = vunpack.c.l.s4 1934713408
    %v1811 = vunpack.c.0.s8 %v1810
    %v1812 = vlaneseq
    %v1813 = vshrl.u32 %v1812, 7
    %v1814 = vsub.s32 %v1811, %v1813
    %v1815 = vrot.slane %v1801, %v1814
    %v1816 = vcombine.low %v1783, %v1799
    %v1817 = vcombine.high %v1783, %v1799
    %v1819 = vunpack.c.l.s4 1934713408
    %v1820 = vunpack.c.0.s8 %v1819
    %v1821 = vlaneseq
    %v1822 = vshrl.u32 %v1821, 7
    %v1823 = vsub.s32 %v1820, %v1822
    %v1824 = vrot.slane %v1816, %v1823
    %v1826 = vunpack.c.l.s4 1934713408
    %v1827 = vunpack.c.0.s8 %v1826
    %v1828 = vlaneseq
    %v1829 = vshrl.u32 %v1828, 7
    %v1830 = vsub.s32 %v1827, %v1829
    %v1831 = vrot.slane %v1817, %v1830
    %v1832 = vcombine.high %v1808, 0.0
    %v1833 = vcombine.high %v1815, 0.0
    %v1834 = vcombine.high %v1824, 0.0
    %v1835 = vcombine.high %v1831, 0.0
    %v1836 = vcombine.low %v1522, %v1684
    %v1837 = vcombine.high %v1522, %v1684
    %v1839 = vunpack.c.l.s4 1983009808
    %v1840 = vunpack.c.0.s8 %v1839
    %v1841 = vlaneseq
    %v1842 = vshrl.u32 %v1841, 7
    %v1843 = vsub.s32 %v1840, %v1842
    %v1844 = vrot.slane %v1836, %v1843
    %v1846 = vunpack.c.l.s4 1983009808
    %v1847 = vunpack.c.0.s8 %v1846
    %v1848 = vlaneseq
    %v1849 = vshrl.u32 %v1848, 7
    %v1850 = vsub.s32 %v1847, %v1849
    %v1851 = vrot.slane %v1837, %v1850
    %v1852 = vcombine.low %v1603, %v1765
    %v1853 = vcombine.high %v1603, %v1765
    %v1855 = vunpack.c.l.s4 1983009808
    %v1856 = vunpack.c.0.s8 %v1855
    %v1857 = vlaneseq
    %v1858 = vshrl.u32 %v1857, 7
    %v1859 = vsub.s32 %v1856, %v1858
    %v1860 = vrot.slane %v1852, %v1859
    %v1862 = vunpack.c.l.s4 1983009808
    %v1863 = vunpack.c.0.s8 %v1862
    %v1864 = vlaneseq
    %v1865 = vshrl.u32 %v1864, 7
    %v1866 = vsub.s32 %v1863, %v1865
    %v1867 = vrot.slane %v1853, %v1866
    %v1868 = vcombine.low %v1844, %v1860
    %v1869 = vcombine.high %v1844, %v1860
    %v1871 = vunpack.c.l.s4 1934713408
    %v1872 = vunpack.c.0.s8 %v1871
    %v1873 = vlaneseq
    %v1874 = vshrl.u32 %v1873, 7
    %v1875 = vsub.s32 %v1872, %v1874
    %v1876 = vrot.slane %v1868, %v1875
    %v1878 = vunpack.c.l.s4 1934713408
    %v1879 = vunpack.c.0.s8 %v1878
    %v1880 = vlaneseq
    %v1881 = vshrl.u32 %v1880, 7
    %v1882 = vsub.s32 %v1879, %v1881
    %v1883 = vrot.slane %v1869, %v1882
    %v1884 = vcombine.low %v1851, %v1867
    %v1885 = vcombine.high %v1851, %v1867
    %v1887 = vunpack.c.l.s4 1934713408
    %v1888 = vunpack.c.0.s8 %v1887
    %v1889 = vlaneseq
    %v1890 = vshrl.u32 %v1889, 7
    %v1891 = vsub.s32 %v1888, %v1890
    %v1892 = vrot.slane %v1884, %v1891
    %v1894 = vunpack.c.l.s4 1934713408
    %v1895 = vunpack.c.0.s8 %v1894
    %v1896 = vlaneseq
    %v1897 = vshrl.u32 %v1896, 7
    %v1898 = vsub.s32 %v1895, %v1897
    %v1899 = vrot.slane %v1885, %v1898
    %v1900 = vcombine.high %v1876, 0.0
    %v1901 = vcombine.high %v1883, 0.0
    %v1902 = vcombine.high %v1892, 0.0
    %v1903 = vcombine.high %v1899, 0.0
    %v1904 = vcombine.low %v1808, %v1815
    %v1906 = vunpack.c.l.s4 1983009808
    %v1907 = vunpack.c.0.s8 %v1906
    %v1908 = vlaneseq
    %v1909 = vshrl.u32 %v1908, 7
    %v1910 = vsub.s32 %v1907, %v1909
    %v1911 = vrot.slane %v1904, %v1910
    %v1912 = vcombine.low %v1832, %v1833
    %v1914 = vunpack.c.l.s4 1983009808
    %v1915 = vunpack.c.0.s8 %v1914
    %v1916 = vlaneseq
    %v1917 = vshrl.u32 %v1916, 7
    %v1918 = vsub.s32 %v1915, %v1917
    %v1919 = vrot.slane %v1912, %v1918
    %v1920 = vcombine.low %v1824, %v1831
    %v1922 = vunpack.c.l.s4 1983009808
    %v1923 = vunpack.c.0.s8 %v1922
    %v1924 = vlaneseq
    %v1925 = vshrl.u32 %v1924, 7
    %v1926 = vsub.s32 %v1923, %v1925
    %v1927 = vrot.slane %v1920, %v1926
    %v1928 = vcombine.low %v1834, %v1835
    %v1930 = vunpack.c.l.s4 1983009808
    %v1931 = vunpack.c.0.s8 %v1930
    %v1932 = vlaneseq
    %v1933 = vshrl.u32 %v1932, 7
    %v1934 = vsub.s32 %v1931, %v1933
    %v1935 = vrot.slane %v1928, %v1934
    %v1936 = vcombine.low %v1911, %v1919
    %v1937 = vcombine.high %v1911, %v1919
    %v1939 = vunpack.c.l.s4 1934713408
    %v1940 = vunpack.c.0.s8 %v1939
    %v1941 = vlaneseq
    %v1942 = vshrl.u32 %v1941, 7
    %v1943 = vsub.s32 %v1940, %v1942
    %v1944 = vrot.slane %v1936, %v1943
    %v1946 = vunpack.c.l.s4 1934713408
    %v1947 = vunpack.c.0.s8 %v1946
    %v1948 = vlaneseq
    %v1949 = vshrl.u32 %v1948, 7
    %v1950 = vsub.s32 %v1947, %v1949
    %v1951 = vrot.slane %v1937, %v1950
    %v1952 = vcombine.low %v1927, %v1935
    %v1953 = vcombine.high %v1927, %v1935
    %v1955 = vunpack.c.l.s4 1934713408
    %v1956 = vunpack.c.0.s8 %v1955
    %v1957 = vlaneseq
    %v1958 = vshrl.u32 %v1957, 7
    %v1959 = vsub.s32 %v1956, %v1958
    %v1960 = vrot.slane %v1952, %v1959
    %v1962 = vunpack.c.l.s4 1934713408
    %v1963 = vunpack.c.0.s8 %v1962
    %v1964 = vlaneseq
    %v1965 = vshrl.u32 %v1964, 7
    %v1966 = vsub.s32 %v1963, %v1965
    %v1967 = vrot.slane %v1953, %v1966
    %v1968 = vcombine.low %v1944, %v1960
    %v1969 = vcombine.high %v1944, %v1960
    %v1970 = vcombine.low %v1951, %v1967
    %v1971 = vcombine.high %v1951, %v1967
    %v1972 = vcombine.low %v1876, %v1883
    %v1974 = vunpack.c.l.s4 1983009808
    %v1975 = vunpack.c.0.s8 %v1974
    %v1976 = vlaneseq
    %v1977 = vshrl.u32 %v1976, 7
    %v1978 = vsub.s32 %v1975, %v1977
    %v1979 = vrot.slane %v1972, %v1978
    %v1980 = vcombine.low %v1900, %v1901
    %v1982 = vunpack.c.l.s4 1983009808
    %v1983 = vunpack.c.0.s8 %v1982
    %v1984 = vlaneseq
    %v1985 = vshrl.u32 %v1984, 7
    %v1986 = vsub.s32 %v1983, %v1985
    %v1987 = vrot.slane %v1980, %v1986
    %v1988 = vcombine.low %v1892, %v1899
    %v1990 = vunpack.c.l.s4 1983009808
    %v1991 = vunpack.c.0.s8 %v1990
    %v1992 = vlaneseq
    %v1993 = vshrl.u32 %v1992, 7
    %v1994 = vsub.s32 %v1991, %v1993
    %v1995 = vrot.slane %v1988, %v1994
    %v1996 = vcombine.low %v1902, %v1903
    %v1998 = vunpack.c.l.s4 1983009808
    %v1999 = vunpack.c.0.s8 %v1998
    %v2000 = vlaneseq
    %v2001 = vshrl.u32 %v2000, 7
    %v2002 = vsub.s32 %v1999, %v2001
    %v2003 = vrot.slane %v1996, %v2002
    %v2004 = vcombine.low %v1979, %v1987
    %v2005 = vcombine.high %v1979, %v1987
    %v2007 = vunpack.c.l.s4 1934713408
    %v2008 = vunpack.c.0.s8 %v2007
    %v2009 = vlaneseq
    %v2010 = vshrl.u32 %v2009, 7
    %v2011 = vsub.s32 %v2008, %v2010
    %v2012 = vrot.slane %v2004, %v2011
    %v2014 = vunpack.c.l.s4 1934713408
    %v2015 = vunpack.c.0.s8 %v2014
    %v2016 = vlaneseq
    %v2017 = vshrl.u32 %v2016, 7
    %v2018 = vsub.s32 %v2015, %v2017
    %v2019 = vrot.slane %v2005, %v2018
    %v2020 = vcombine.low %v1995, %v2003
    %v2021 = vcombine.high %v1995, %v2003
    %v2023 = vunpack.c.l.s4 1934713408
    %v2024 = vunpack.c.0.s8 %v2023
    %v2025 = vlaneseq
    %v2026 = vshrl.u32 %v2025, 7
    %v2027 = vsub.s32 %v2024, %v2026
    %v2028 = vrot.slane %v2020, %v2027
    %v2030 = vunpack.c.l.s4 1934713408
    %v2031 = vunpack.c.0.s8 %v2030
    %v2032 = vlaneseq
    %v2033 = vshrl.u32 %v2032, 7
    %v2034 = vsub.s32 %v2031, %v2033
    %v2035 = vrot.slane %v2021, %v2034
    %v2036 = vcombine.low %v2012, %v2028
    %v2037 = vcombine.high %v2012, %v2028
    %v2038 = vcombine.low %v2019, %v2035
    %v2039 = vcombine.high %v2019, %v2035
    %2042 = vrot.lane.b32.xlu0 %v1969, 8
    %v2043 = vpop.permute.xlu0 %2042
    %2044 = vrot.lane.b32.xlu0 %v2037, 8
    %v2045 = vpop.permute.xlu0 %2044
    %2050 = vrot.lane.b32.xlu0 %v1970, 16
    %v2051 = vpop.permute.xlu0 %2050
    %2052 = vrot.lane.b32.xlu0 %v2038, 16
    %v2053 = vpop.permute.xlu0 %2052
    %2058 = vrot.lane.b32.xlu0 %v1971, 24
    %v2059 = vpop.permute.xlu0 %2058
    %2060 = vrot.lane.b32.xlu0 %v2039, 24
    %v2061 = vpop.permute.xlu0 %2060
    %v2064 = vsel %vm1006, %v1968, %v2043
    %v2065 = vsel %vm1006, %v2036, %v2045
    %v2066 = vsel %vm1355, %v2064, %v2051
    %v2067 = vsel %vm1355, %v2065, %v2053
    %vm2068 = vcmask 195584
    %v2069 = vsel %vm2068, %v2066, %v2059
    %v2070 = vsel %vm2068, %v2067, %v2061
    %v2071 = vpack.c.bf16 %v2070, %v2069
    %v2072 = vld [vmem:[%s4] sm:$0xf]
    %v2073 = vld [vmem:[%s4 + $0x4] sm:$0xf]
    %v2074 = vld [vmem:[%s4 + $0x8] sm:$0xf]
    %v2075 = vld [vmem:[%s4 + $0xc] sm:$0xf]
    %v2076 = vld [vmem:[%s5] sm:$0x1]
    %v2078 = vlaneseq
    %v2079 = vshrl.u32 %v2078, 7
    %v2080 = vsub.s32 0, %v2079
    %v2081 = vrot.slane %v2076, %v2080
    %v2087 = vunpack.c.l.b16 %v2072
    %v2088 = vunpack.c.l.b16 %v2073
    %v2089 = vunpack.c.l.b16 %v2074
    %v2090 = vunpack.c.l.b16 %v2075
    %v2091 = vpack.c.b16 %v2088, %v2087
    %v2092 = vpack.c.b16 %v2090, %v2089
    %v2096 = vsel %vm75, %v2071, 0
    %2098 = vmatprep.subr.bf16.mxu0 0
    %2099 = vmatpush1.bf16.msra.mxu0 %v2091
    %2100 = vmatprep.subr.bf16.mxu0 0
    %2101 = vmatpush1.bf16.msra.mxu0 %v2092
    %2102 = vmatprep.subr.bf16.mxu0 0
    %2103 = vmatpush1.bf16.msra.mxu0 0
    %2104 = vmatprep.subr.bf16.mxu0 0
    %2105 = vmatpush1.bf16.msra.mxu0 0
    %2106 = vmatprep.subr.bf16.mxu0 0
    %2107 = vmatpush1.bf16.msra.mxu0 0
    %2108 = vmatprep.subr.bf16.mxu0 0
    %2109 = vmatpush1.bf16.msra.mxu0 0
    %2110 = vmatprep.subr.bf16.mxu0 0
    %2111 = vmatpush1.bf16.msra.mxu0 0
    %2112 = vmatprep.subr.bf16.mxu0 0
    %2113 = vmatpush1.bf16.msra.mxu0 0
    %2114 = vmatprep.subr.bf16.mxu0 0
    %2115 = vmatpush1.bf16.msra.mxu0 0
    %2116 = vmatprep.subr.bf16.mxu0 0
    %2117 = vmatpush1.bf16.msra.mxu0 0
    %2118 = vmatprep.subr.bf16.mxu0 0
    %2119 = vmatpush1.bf16.msra.mxu0 0
    %2120 = vmatprep.subr.bf16.mxu0 0
    %2121 = vmatpush1.bf16.msra.mxu0 0
    %2122 = vmatprep.subr.bf16.mxu0 0
    %2123 = vmatpush1.bf16.msra.mxu0 0
    %2124 = vmatprep.subr.bf16.mxu0 0
    %2125 = vmatpush1.bf16.msra.mxu0 0
    %2126 = vmatprep.subr.bf16.mxu0 0
    %2127 = vmatpush1.bf16.msra.mxu0 0
    %2128 = vmatprep.subr.bf16.mxu0 0
    %2129 = vmatpush1.bf16.msra.mxu0 0
    %2130 = vmatprep.mubr.bf16.mxu0 0
    %2131 = vmatmul.mubr.bf16.gmra.mrb[0].mxu0 %v2096
    %v2132 = vpop.f32.mrb[0].mxu0
    %v2133 = vadd.f32 %v2081, %v2132
    %v2134 = vpop.f32.mrb[0].mxu0
    %v2135 = vpop.f32.mrb[0].mxu0
    %v2136 = vadd.f32 %v2081, %v2135
    %v2137 = vpop.f32.mrb[0].mxu0
    %2138 = vdwg.mxu0
    %v2139 = vadd.f32 %v49, %v2133
    %v2140 = vadd.f32 %v50, %v2136
    %v2141 = vld [vmem:[%s10] sm:$0x1]
    %v2142 = vld [vmem:[%s11] sm:$0x1]
    %v2143 = vsel %vm75, %v2139, 0.0
    %2144 = vadd.xlane.f32.xlu0 %v2143
    %v2145 = vpop.xlane.xlu0 %2144
    %v2146 = vsel %vm75, %v2140, 0.0
    %2147 = vadd.xlane.f32.xlu0 %v2146
    %v2148 = vpop.xlane.xlu0 %2147
    %v2149 = vrcp.pop 32.0
    %v2150 = vmul.f32 %v2145, %v2149
    %v2151 = vmul.f32 %v2148, %v2149
    %v2152 = vsub.f32 %v2139, %v2150
    %v2153 = vsub.f32 %v2140, %v2151
    %v2154 = vmul.f32 %v2152, %v2152
    %v2155 = vmul.f32 %v2153, %v2153
    %v2156 = vsel %vm75, %v2154, 0.0
    %2157 = vadd.xlane.f32.xlu0 %v2156
    %v2158 = vpop.xlane.xlu0 %2157
    %v2159 = vsel %vm75, %v2155, 0.0
    %2160 = vadd.xlane.f32.xlu0 %v2159
    %v2161 = vpop.xlane.xlu0 %2160
    %v2162 = vmul.f32 %v2158, %v2149
    %v2163 = vmul.f32 %v2161, %v2149
    %v2164 = vadd.f32 %v2162, 1e-05
    %v2165 = vadd.f32 %v2163, 1e-05
    %v2166 = vrsqrt.pop %v2164
    %v2167 = vrsqrt.pop %v2165
    %v2168 = vmul.f32 %v2152, %v2166
    %v2169 = vmul.f32 %v2153, %v2167
    %v2171 = vlaneseq
    %v2172 = vshrl.u32 %v2171, 7
    %v2173 = vsub.s32 0, %v2172
    %v2174 = vrot.slane %v2141, %v2173
    %v2176 = vmul.f32 %v2168, %v2174
    %v2177 = vmul.f32 %v2169, %v2174
    %v2179 = vlaneseq
    %v2180 = vshrl.u32 %v2179, 7
    %v2181 = vsub.s32 0, %v2180
    %v2182 = vrot.slane %v2142, %v2181
    %v2184 = vadd.f32 %v2176, %v2182
    %v2185 = vadd.f32 %v2177, %v2182
    %v2186 = vpack.c.bf16 %v2185, %v2184
    %v2187 = vld [vmem:[%s6] sm:$0xf]
    %v2188 = vld [vmem:[%s6 + $0x4] sm:$0xf]
    %v2189 = vld [vmem:[%s6 + $0x8] sm:$0xf]
    %v2190 = vld [vmem:[%s6 + $0xc] sm:$0xf]
    %v2191 = vld [vmem:[%s7] sm:$0x1]
    %v2193 = vlaneseq
    %v2194 = vshrl.u32 %v2193, 7
    %v2195 = vsub.s32 0, %v2194
    %v2196 = vrot.slane %v2191, %v2195
    %v2202 = vunpack.c.l.b16 %v2187
    %v2203 = vunpack.c.l.b16 %v2188
    %v2204 = vunpack.c.l.b16 %v2189
    %v2205 = vunpack.c.l.b16 %v2190
    %v2206 = vpack.c.b16 %v2203, %v2202
    %v2207 = vpack.c.b16 %v2205, %v2204
    %v2211 = vsel %vm75, %v2186, 0
    %2213 = vmatprep.subr.bf16.mxu0 0
    %2214 = vmatpush1.bf16.msra.mxu0 %v2206
    %2215 = vmatprep.subr.bf16.mxu0 0
    %2216 = vmatpush1.bf16.msra.mxu0 %v2207
    %2217 = vmatprep.subr.bf16.mxu0 0
    %2218 = vmatpush1.bf16.msra.mxu0 0
    %2219 = vmatprep.subr.bf16.mxu0 0
    %2220 = vmatpush1.bf16.msra.mxu0 0
    %2221 = vmatprep.subr.bf16.mxu0 0
    %2222 = vmatpush1.bf16.msra.mxu0 0
    %2223 = vmatprep.subr.bf16.mxu0 0
    %2224 = vmatpush1.bf16.msra.mxu0 0
    %2225 = vmatprep.subr.bf16.mxu0 0
    %2226 = vmatpush1.bf16.msra.mxu0 0
    %2227 = vmatprep.subr.bf16.mxu0 0
    %2228 = vmatpush1.bf16.msra.mxu0 0
    %2229 = vmatprep.subr.bf16.mxu0 0
    %2230 = vmatpush1.bf16.msra.mxu0 0
    %2231 = vmatprep.subr.bf16.mxu0 0
    %2232 = vmatpush1.bf16.msra.mxu0 0
    %2233 = vmatprep.subr.bf16.mxu0 0
    %2234 = vmatpush1.bf16.msra.mxu0 0
    %2235 = vmatprep.subr.bf16.mxu0 0
    %2236 = vmatpush1.bf16.msra.mxu0 0
    %2237 = vmatprep.subr.bf16.mxu0 0
    %2238 = vmatpush1.bf16.msra.mxu0 0
    %2239 = vmatprep.subr.bf16.mxu0 0
    %2240 = vmatpush1.bf16.msra.mxu0 0
    %2241 = vmatprep.subr.bf16.mxu0 0
    %2242 = vmatpush1.bf16.msra.mxu0 0
    %2243 = vmatprep.subr.bf16.mxu0 0
    %2244 = vmatpush1.bf16.msra.mxu0 0
    %2245 = vmatprep.mubr.bf16.mxu0 0
    %2246 = vmatmul.mubr.bf16.gmra.mrb[0].mxu0 %v2211
    %v2247 = vpop.f32.mrb[0].mxu0
    %v2248 = vadd.f32 %v2196, %v2247
    %v2249 = vpop.f32.mrb[0].mxu0
    %v2250 = vpop.f32.mrb[0].mxu0
    %v2251 = vadd.f32 %v2196, %v2250
    %v2252 = vpop.f32.mrb[0].mxu0
    %2253 = vdwg.mxu0
    %v2254 = vmax.f32 %v2248, 0.0
    %v2255 = vmax.f32 %v2251, 0.0
    %v2256 = vpack.c.bf16 %v2255, %v2254
    %v2257 = vld [vmem:[%s8] sm:$0xf]
    %v2258 = vld [vmem:[%s8 + $0x4] sm:$0xf]
    %v2259 = vld [vmem:[%s8 + $0x8] sm:$0xf]
    %v2260 = vld [vmem:[%s8 + $0xc] sm:$0xf]
    %v2261 = vld [vmem:[%s8 + $0x10] sm:$0xf]
    %v2262 = vld [vmem:[%s8 + $0x14] sm:$0xf]
    %v2263 = vld [vmem:[%s8 + $0x18] sm:$0xf]
    %v2264 = vld [vmem:[%s8 + $0x1c] sm:$0xf]
    %v2265 = vld [vmem:[%s8 + $0x20] sm:$0xf]
    %v2266 = vld [vmem:[%s8 + $0x24] sm:$0xf]
    %v2267 = vld [vmem:[%s8 + $0x28] sm:$0xf]
    %v2268 = vld [vmem:[%s8 + $0x2c] sm:$0xf]
    %v2269 = vld [vmem:[%s8 + $0x30] sm:$0xf]
    %v2270 = vld [vmem:[%s8 + $0x34] sm:$0xf]
    %v2271 = vld [vmem:[%s8 + $0x38] sm:$0xf]
    %v2272 = vld [vmem:[%s8 + $0x3c] sm:$0xf]
    %v2273 = vld [vmem:[%s9] sm:$0x1]
    %v2275 = vlaneseq
    %v2276 = vshrl.u32 %v2275, 7
    %v2277 = vsub.s32 0, %v2276
    %v2278 = vrot.slane %v2273, %v2277
    %v2296 = vunpack.c.l.b16 %v2257
    %v2297 = vunpack.c.l.b16 %v2258
    %v2298 = vunpack.c.l.b16 %v2259
    %v2299 = vunpack.c.l.b16 %v2260
    %v2300 = vunpack.c.l.b16 %v2261
    %v2301 = vunpack.c.l.b16 %v2262
    %v2302 = vunpack.c.l.b16 %v2263
    %v2303 = vunpack.c.l.b16 %v2264
    %v2304 = vunpack.c.l.b16 %v2265
    %v2305 = vunpack.c.l.b16 %v2266
    %v2306 = vunpack.c.l.b16 %v2267
    %v2307 = vunpack.c.l.b16 %v2268
    %v2308 = vunpack.c.l.b16 %v2269
    %v2309 = vunpack.c.l.b16 %v2270
    %v2310 = vunpack.c.l.b16 %v2271
    %v2311 = vunpack.c.l.b16 %v2272
    %v2312 = vpack.c.b16 %v2297, %v2296
    %v2313 = vpack.c.b16 %v2299, %v2298
    %v2314 = vpack.c.b16 %v2301, %v2300
    %v2315 = vpack.c.b16 %v2303, %v2302
    %v2316 = vpack.c.b16 %v2305, %v2304
    %v2317 = vpack.c.b16 %v2307, %v2306
    %v2318 = vpack.c.b16 %v2309, %v2308
    %v2319 = vpack.c.b16 %v2311, %v2310
    %2328 = vmatprep.subr.bf16.mxu0 0
    %2329 = vmatpush1.bf16.msra.mxu0 %v2312
    %2330 = vmatprep.subr.bf16.mxu0 0
    %2331 = vmatpush1.bf16.msra.mxu0 %v2313
    %2332 = vmatprep.subr.bf16.mxu0 0
    %2333 = vmatpush1.bf16.msra.mxu0 %v2314
    %2334 = vmatprep.subr.bf16.mxu0 0
    %2335 = vmatpush1.bf16.msra.mxu0 %v2315
    %2336 = vmatprep.subr.bf16.mxu0 0
    %2337 = vmatpush1.bf16.msra.mxu0 %v2316
    %2338 = vmatprep.subr.bf16.mxu0 0
    %2339 = vmatpush1.bf16.msra.mxu0 %v2317
    %2340 = vmatprep.subr.bf16.mxu0 0
    %2341 = vmatpush1.bf16.msra.mxu0 %v2318
    %2342 = vmatprep.subr.bf16.mxu0 0
    %2343 = vmatpush1.bf16.msra.mxu0 %v2319
    %2344 = vmatprep.subr.bf16.mxu0 0
    %2345 = vmatpush1.bf16.msra.mxu0 0
    %2346 = vmatprep.subr.bf16.mxu0 0
    %2347 = vmatpush1.bf16.msra.mxu0 0
    %2348 = vmatprep.subr.bf16.mxu0 0
    %2349 = vmatpush1.bf16.msra.mxu0 0
    %2350 = vmatprep.subr.bf16.mxu0 0
    %2351 = vmatpush1.bf16.msra.mxu0 0
    %2352 = vmatprep.subr.bf16.mxu0 0
    %2353 = vmatpush1.bf16.msra.mxu0 0
    %2354 = vmatprep.subr.bf16.mxu0 0
    %2355 = vmatpush1.bf16.msra.mxu0 0
    %2356 = vmatprep.subr.bf16.mxu0 0
    %2357 = vmatpush1.bf16.msra.mxu0 0
    %2358 = vmatprep.subr.bf16.mxu0 0
    %2359 = vmatpush1.bf16.msra.mxu0 0
    %2360 = vmatprep.mubr.bf16.mxu0 0
    %2361 = vmatmul.mubr.bf16.gmra.mrb[0].mxu0 %v2256
    %v2362 = vpop.f32.mrb[0].mxu0
    %v2363 = vadd.f32 %v2278, %v2362
    %v2364 = vpop.f32.mrb[0].mxu0
    %v2365 = vpop.f32.mrb[0].mxu0
    %v2366 = vadd.f32 %v2278, %v2365
    %v2367 = vpop.f32.mrb[0].mxu0
    %2368 = vdwg.mxu0
    %v2369 = vadd.f32 %v2184, %v2363
    %v2370 = vadd.f32 %v2185, %v2366
    %v2371 = vld [vmem:[%s12] sm:$0x1]
    %v2372 = vld [vmem:[%s13] sm:$0x1]
    %v2373 = vsel %vm75, %v2369, 0.0
    %2374 = vadd.xlane.f32.xlu0 %v2373
    %v2375 = vpop.xlane.xlu0 %2374
    %v2376 = vsel %vm75, %v2370, 0.0
    %2377 = vadd.xlane.f32.xlu0 %v2376
    %v2378 = vpop.xlane.xlu0 %2377
    %v2379 = vmul.f32 %v2375, %v2149
    %v2380 = vmul.f32 %v2378, %v2149
    %v2381 = vsub.f32 %v2369, %v2379
    %v2382 = vsub.f32 %v2370, %v2380
    %v2383 = vmul.f32 %v2381, %v2381
    %v2384 = vmul.f32 %v2382, %v2382
    %v2385 = vsel %vm75, %v2383, 0.0
    %2386 = vadd.xlane.f32.xlu0 %v2385
    %v2387 = vpop.xlane.xlu0 %2386
    %v2388 = vsel %vm75, %v2384, 0.0
    %2389 = vadd.xlane.f32.xlu0 %v2388
    %v2390 = vpop.xlane.xlu0 %2389
    %v2391 = vmul.f32 %v2387, %v2149
    %v2392 = vmul.f32 %v2390, %v2149
    %v2393 = vadd.f32 %v2391, 1e-05
    %v2394 = vadd.f32 %v2392, 1e-05
    %v2395 = vrsqrt.pop %v2393
    %v2396 = vrsqrt.pop %v2394
    %v2397 = vmul.f32 %v2381, %v2395
    %v2398 = vmul.f32 %v2382, %v2396
    %v2400 = vlaneseq
    %v2401 = vshrl.u32 %v2400, 7
    %v2402 = vsub.s32 0, %v2401
    %v2403 = vrot.slane %v2371, %v2402
    %v2405 = vmul.f32 %v2397, %v2403
    %v2406 = vmul.f32 %v2398, %v2403
    %v2408 = vlaneseq
    %v2409 = vshrl.u32 %v2408, 7
    %v2410 = vsub.s32 0, %v2409
    %v2411 = vrot.slane %v2372, %v2410
    %v2413 = vadd.f32 %v2405, %v2411
    %v2414 = vadd.f32 %v2406, %v2411
    %2415 = vst.msk [vmem:[#allocation2] sm:$0xff] %vm75, %v2413
    %2416 = vst.msk [vmem:[#allocation2 + $0x8] sm:$0xff] %vm75, %v2414
    // Predicated region
    $region58: #{tpu_custom_call.1} parent=1 // pred_check
      _
    $region59: #{tpu_custom_call.1} parent=1 // pred_check_branch
      %2418 = sbr.rel (0) target = $region61
    $region60: #{tpu_custom_call.1} parent=1 // pred_region
      %s2420 = ssub.s32 256, 256
      %2421 = vsyncadd [#allocation3], %s2420
      %s2422 = sshll.u32 [#allocation2], 4
      %s2423 = int_to_ptr.vmem [resolvable:$true] %s2422
      %2428 = dma.vmem_to_hbm [thread:$0]  %s2423, 256, %s14, [#allocation3], 128, 128, 8
    $region61: #{tpu_custom_call.1} parent=1 // pred_fallthru
      _
    // Predicated region
    $region62: #{tpu_custom_call.1} parent=1 // pred_check
      _
    $region63: #{tpu_custom_call.1} parent=1 // pred_check_branch
      %2430 = sbr.rel (0) target = $region65
    $region64: #{tpu_custom_call.1} parent=1 // pred_region
      %2431 = dma.done [#allocation3], 256
    $region65: #{tpu_custom_call.1} parent=1 // pred_fallthru
      _
    %2432 = vsyncpa [#allocation3], 1

</llo_original>
